<compile_context>
chip_gen: v7x
topology: tpu7x:2x2x1
jax: 0.10.0
libtpu: 0.0.40
codegen_flags: <defaults>
</compile_context>

<pallas_src>
import functools

import jax
import jax.numpy as jnp
from jax import lax
from jax.experimental import pallas as pl
from jax.experimental.pallas import tpu as pltpu


def _attention_kernel(hid_ref, enc_ref, w1_ref, b1_ref, w2_ref, b2_ref, v_ref,
                      ctx_ref, attn_ref, q_sc, m_sc, l_sc, acc_sc,
                      *, seq_len, s_tile, needs_mask):
    # hid_ref  : (TB, L*H)           pre-concatenated decoder hidden ("query")
    # enc_ref  : (TB, ST, 2H)        encoder outputs ("values"), one seq tile
    # ctx_ref  : (TB, 2H)            context output (resident across S axis)
    # attn_ref : (n_s, TB, ST)       attention output (resident across S axis)
    si = pl.program_id(1)
    n_s = pl.num_programs(1)
    TB, ST, H2 = enc_ref.shape
    H = w2_ref.shape[-1]

    @pl.when(si == 0)
    def _init():
        # Q = concat_hidden @ W1 + b1 : one MXU call (K = L*H), bf16 operands,
        # f32 accumulation. Cached in scratch, reused by every S step.
        q = jnp.dot(hid_ref[...].astype(jnp.bfloat16),
                    w1_ref[...].astype(jnp.bfloat16),
                    preferred_element_type=jnp.float32) + b1_ref[...]
        q_sc[...] = q
        m_sc[...] = jnp.full(m_sc.shape, -jnp.inf, dtype=jnp.float32)
        l_sc[...] = jnp.zeros(l_sc.shape, dtype=jnp.float32)
        acc_sc[...] = jnp.zeros(acc_sc.shape, dtype=jnp.float32)

    enc = enc_ref[...]                                         # (TB, ST, 2H) f32

    # E = enc @ W2 + b2 folded into one (TB*ST, 2H) x (2H, H) bf16 MXU matmul.
    # ST is a multiple of 8, so both reshapes are layout no-ops.
    e = jnp.dot(enc.reshape(TB * ST, H2).astype(jnp.bfloat16),
                w2_ref[...].astype(jnp.bfloat16),
                preferred_element_type=jnp.float32) + b2_ref[...]
    # tanh / softmax arithmetic stays f32 (v5e has no bf16 VPU/EUP).
    t = jnp.tanh(e.reshape(TB, ST, H) + q_sc[...][:, None, :])  # (TB, ST, H)

    # Scores via VPU multiply + lane (H) reduction; (TB, ST) lane-dense over
    # the sequence. (If XLU saturates on v6e this could move to an MXU matvec.)
    scores = jnp.sum(t * v_ref[...], axis=-1)                   # (TB, ST)

    if needs_mask:
        col = si * s_tile + lax.broadcasted_iota(jnp.int32, (TB, ST), 1)
        scores = jnp.where(col < seq_len, scores, -1e30)

    # Stash raw scores in the resident attention block (leading-axis store);
    # normalized once in the finalize step below.
    attn_ref[si] = scores

    # Online-softmax accumulation of the context numerator.
    m_prev = m_sc[...]
    m_new = jnp.maximum(m_prev, jnp.max(scores, axis=-1, keepdims=True))
    alpha = jnp.exp(m_prev - m_new)
    p = jnp.exp(scores - m_new)                                 # (TB, ST)
    l_sc[...] = alpha * l_sc[...] + jnp.sum(p, axis=-1, keepdims=True)
    acc_sc[...] = alpha * acc_sc[...] + jnp.sum(p[:, :, None] * enc, axis=1)
    m_sc[...] = m_new

    @pl.when(si == n_s - 1)
    def _finalize():
        inv_l = pl.reciprocal(l_sc[...], approx=False)          # exact parity
        ctx_ref[...] = (acc_sc[...] * inv_l).astype(ctx_ref.dtype)
        p_all = jnp.exp(attn_ref[...] - m_sc[...][None, :, :])  # (n_s, TB, ST)
        attn_ref[...] = (p_all * inv_l[None, :, :]).astype(attn_ref.dtype)


def _pick_batch_tile(B):
    """Largest sublane-aligned tile (<=64) that leaves >=2 parallel grid steps."""
    if B % 8 != 0:
        return B
    for t in (64, 32, 16, 8):
        if B % t == 0 and B // t >= 2:
            return t
    return 8 if B >= 8 else B


def _pick_seq_tile(S, TB, H, H2):
    """Sequence tile (multiple of 8; lane-dense when multi-tiled) + padded S."""
    def rup(x, m):
        return ((x + m - 1) // m) * m

    s8 = rup(S, 8)
    # Rough per-S-row working set (f32): double-buffered enc block + e/tanh/
    # weighted-enc temps. Budget keeps the kernel well inside v7x's 64 MiB.
    bytes_per_row = TB * (2 * H2 + 2 * H + H2) * 4
    budget = 24 * 1024 * 1024
    max_rows = max(8, budget // max(bytes_per_row, 1))
    if s8 <= min(max_rows, 512):
        return s8, s8                       # single sequence step
    tile = min(512, (max_rows // 128) * 128)
    tile = max(tile, 128)                   # lane-dense attention stores
    return tile, rup(S, tile)


def _vmem_limit_bytes(TB, S_TILE, n_s, H, LH, H2):
    f = 4
    est = (2 * TB * S_TILE * H2 * f                 # enc block (double-buffered)
           + 2 * TB * LH * f                        # hidden block
           + (LH * H + H2 * H + 3 * H) * f          # weights / biases
           + 2 * TB * H2 * f                        # context output
           + 2 * n_s * TB * S_TILE * f              # attention output (resident)
           + TB * (H + 2 + H2) * f                  # scratch
           + 3 * TB * S_TILE * max(H, H2) * f)      # in-kernel temporaries
    return int(min(max(2 * est, 32 * 1024 * 1024), 64 * 1024 * 1024))


def attention_forward(hidden, encodings, params):
    """hidden: [L, B, H], encodings: [B, S, 2H] -> (context [B, 2H], weights [B, S])."""
    w1, b1 = params["w1"], params["b1"]
    w2, b2 = params["w2"], params["b2"]
    v = params["v"]

    L, B, H = hidden.shape
    S, H2 = encodings.shape[1], encodings.shape[2]
    LH = L * H

    # Pre-concatenate hidden to (B, L*H): a tiny HBM copy that turns the query
    # projection into a single MXU matmul with K = L*H inside the kernel.
    hidden_cat = jnp.moveaxis(hidden, 0, 1).reshape(B, LH)

    TB = _pick_batch_tile(B)
    S_TILE, S_pad = _pick_seq_tile(S, TB, H, H2)
    n_s = S_pad // S_TILE

    enc_in = encodings
    if S_pad != S:
        enc_in = jnp.pad(encodings, ((0, 0), (0, S_pad - S), (0, 0)))

    grid = (B // TB, n_s)
    kernel = functools.partial(_attention_kernel, seq_len=S, s_tile=S_TILE,
                               needs_mask=(S_pad != S))
    vmem_limit = _vmem_limit_bytes(TB, S_TILE, n_s, H, LH, H2)

    def build(single_buffer_consts):
        def const_spec(shape):
            imap = lambda b, s: (0, 0)
            if single_buffer_consts:
                return pl.BlockSpec(shape, imap, pipeline_mode=pl.Buffered(1))
            return pl.BlockSpec(shape, imap)

        return pl.pallas_call(
            kernel,
            out_shape=(
                jax.ShapeDtypeStruct((B, H2), jnp.float32),
                jax.ShapeDtypeStruct((n_s, B, S_TILE), jnp.float32),
            ),
            grid_spec=pltpu.PrefetchScalarGridSpec(
                num_scalar_prefetch=0,
                grid=grid,
                in_specs=[
                    pl.BlockSpec((TB, LH), lambda b, s: (b, 0)),            # hidden (B, L*H)
                    pl.BlockSpec((TB, S_TILE, H2), lambda b, s: (b, s, 0)),  # encodings
                    const_spec((LH, H)),                                     # W1
                    const_spec((1, H)),                                      # b1
                    const_spec((H2, H)),                                     # W2
                    const_spec((1, H)),                                      # b2
                    const_spec((1, H)),                                      # V
                ],
                out_specs=[
                    pl.BlockSpec((TB, H2), lambda b, s: (b, 0)),             # context
                    pl.BlockSpec((n_s, TB, S_TILE), lambda b, s: (0, b, 0)),  # attention
                ],
                scratch_shapes=[
                    pltpu.VMEM((TB, H), jnp.float32),    # cached query projection
                    pltpu.VMEM((TB, 1), jnp.float32),    # running max
                    pltpu.VMEM((TB, 1), jnp.float32),    # running sum-exp
                    pltpu.VMEM((TB, H2), jnp.float32),   # context numerator
                ],
            ),
            compiler_params=pltpu.CompilerParams(
                dimension_semantics=("parallel", "arbitrary"),
                vmem_limit_bytes=vmem_limit,
            ),
        )

    args = (hidden_cat, enc_in, w1, b1, w2, b2, v)
    try:
        ctx, attn_tiled = build(True)(*args)
        jax.block_until_ready((ctx, attn_tiled))
    except Exception:
        # Fallback for JAX versions that reject single-buffered constants.
        ctx, attn_tiled = build(False)(*args)

    # Wrapper-side layout plumbing: (n_s, B, S_TILE) -> (B, S), drop padding.
    attn = jnp.moveaxis(attn_tiled, 0, 1).reshape(B, S_pad)[:, :S]
    return ctx, attn


def init_params(key, num_layers, hidden_size):
    """Deterministic init matching nn.Linear default (uniform +-1/sqrt(fan_in)).
    Matmul weights stored as [in, out] (transposed vs PyTorch); V is (1, H)."""
    LH, H, H2 = num_layers * hidden_size, hidden_size, 2 * hidden_size
    k1, k2, k3, k4, k5 = jax.random.split(key, 5)

    def u(k, shape, fan_in):
        bound = 1.0 / jnp.sqrt(fan_in)
        return jax.random.uniform(k, shape, jnp.float32, -bound, bound)

    return {
        "w1": u(k1, (LH, H), LH),
        "b1": u(k2, (1, H), LH),
        "w2": u(k3, (H2, H), H2),
        "b2": u(k4, (1, H), H2),
        "v": u(k5, (1, H), H),
    }


def attention_ref(hidden, encodings, params):
    """Pure-JAX reference mirroring the PyTorch forward exactly (f32 matmuls)."""
    L, B, H = hidden.shape
    ch = jnp.moveaxis(hidden, 0, 1).reshape(B, L * H)[:, None, :]        # (B,1,LH)
    pre = ch @ params["w1"] + params["b1"] + encodings @ params["w2"] + params["b2"]
    scores = jnp.tanh(pre) @ params["v"].T                               # (B,S,1)
    scores = jnp.swapaxes(scores, 1, 2)                                  # (B,1,S)
    w = jax.nn.softmax(scores, axis=-1)
    ctx = jnp.einsum("bos,bsh->boh", w, encodings)
    return ctx[:, 0], w[:, 0]


if __name__ == "__main__":
    num_layers, hidden_size = 2, 32
    batch, seq = 2, 8

    key = jax.random.PRNGKey(0)
    kp, kh, ke = jax.random.split(key, 3)

    params = init_params(kp, num_layers, hidden_size)
    hidden = jax.random.normal(kh, (num_layers, batch, hidden_size), jnp.float32)
    encodings = jax.random.normal(ke, (batch, seq, 2 * hidden_size), jnp.float32)

    ctx, attn = attention_forward(hidden, encodings, params)
    jax.block_until_ready((ctx, attn))

    ctx_ref_out, attn_ref_out = attention_ref(hidden, encodings, params)
    assert ctx.shape == (batch, 2 * hidden_size)
    assert attn.shape == (batch, seq)
    # bf16 MXU operands (f32 accumulation) loosen parity vs the pure-f32 ref.
    assert jnp.allclose(ctx, ctx_ref_out, atol=2e-2, rtol=2e-2)
    assert jnp.allclose(attn, attn_ref_out, atol=2e-2, rtol=2e-2)
    # Softmax exactness sanity check (exact reciprocal in the kernel).
    assert jnp.allclose(jnp.sum(attn, axis=-1), 1.0, atol=1e-3)

    print("KERNEL_OK")
</pallas_src>

<mosaic_0001>
module attributes {stable_mosaic.version = 11 : i64} {
  func.func @_attention_kernel(%arg0: i32, %arg1: i32, %arg2: memref<2x64xf32, #tpu.memory_space<vmem>>, %arg3: memref<2x8x64xf32, #tpu.memory_space<vmem>>, %arg4: memref<64x32xf32, #tpu.memory_space<vmem>>, %arg5: memref<1x32xf32, #tpu.memory_space<vmem>>, %arg6: memref<64x32xf32, #tpu.memory_space<vmem>>, %arg7: memref<1x32xf32, #tpu.memory_space<vmem>>, %arg8: memref<1x32xf32, #tpu.memory_space<vmem>>, %arg9: memref<2x64xf32, #tpu.memory_space<vmem>>, %arg10: memref<1x2x8xf32, #tpu.memory_space<vmem>>, %arg11: memref<2x32xf32, #tpu.memory_space<vmem>>, %arg12: memref<2x1xf32, #tpu.memory_space<vmem>>, %arg13: memref<2x1xf32, #tpu.memory_space<vmem>>, %arg14: memref<2x64xf32, #tpu.memory_space<vmem>>) attributes {dimension_semantics = [#tpu.dimension_semantics<parallel>, #tpu.dimension_semantics<arbitrary>], iteration_bounds = array<i64: 1, 1>, scalar_prefetch = 0 : i64, scratch_operands = 4 : i64, tpu.core_type = #tpu.core_type<tc>, window_params = [{transform_indices = @transform_0, window_bounds = array<i64: 2, 64>}, {transform_indices = @transform_1, window_bounds = array<i64: 2, 8, 64>}, {pipeline_mode = #tpu.pipeline_mode<synchronous>, transform_indices = @transform_2, window_bounds = array<i64: 64, 32>}, {pipeline_mode = #tpu.pipeline_mode<synchronous>, transform_indices = @transform_3, window_bounds = array<i64: 1, 32>}, {pipeline_mode = #tpu.pipeline_mode<synchronous>, transform_indices = @transform_4, window_bounds = array<i64: 64, 32>}, {pipeline_mode = #tpu.pipeline_mode<synchronous>, transform_indices = @transform_5, window_bounds = array<i64: 1, 32>}, {pipeline_mode = #tpu.pipeline_mode<synchronous>, transform_indices = @transform_6, window_bounds = array<i64: 1, 32>}, {transform_indices = @transform_7, window_bounds = array<i64: 2, 64>}, {transform_indices = @transform_8, window_bounds = array<i64: 1, 2, 8>}]} {
    %c0_i32 = arith.constant 0 : i32
    %0 = arith.cmpi eq, %arg1, %c0_i32 : i32
    %1 = arith.extui %0 : i1 to i32
    %c0_i32_0 = arith.constant 0 : i32
    %2 = arith.cmpi ne, %1, %c0_i32_0 : i32
    scf.if %2 {
      %c0_31 = arith.constant 0 : index
      %c0_32 = arith.constant 0 : index
      %55 = vector.load %arg2[%c0_31, %c0_32] : memref<2x64xf32, #tpu.memory_space<vmem>>, vector<2x64xf32>
      %56 = arith.truncf %55 : vector<2x64xf32> to vector<2x64xbf16>
      %c0_33 = arith.constant 0 : index
      %c0_34 = arith.constant 0 : index
      %57 = vector.load %arg4[%c0_33, %c0_34] : memref<64x32xf32, #tpu.memory_space<vmem>>, vector<64x32xf32>
      %58 = arith.truncf %57 : vector<64x32xf32> to vector<64x32xbf16>
      %cst_35 = arith.constant dense<0.000000e+00> : vector<2x32xf32>
      %59 = tpu.matmul %56, %58, %cst_35 {dimension_numbers = #tpu.dot_dimension_numbers<[1], [0], [0], [1], [0, 0, 1, 1], [], []>} : vector<2x64xbf16>, vector<64x32xbf16>, vector<2x32xf32> -> vector<2x32xf32>
      %c0_36 = arith.constant 0 : index
      %c0_37 = arith.constant 0 : index
      %60 = vector.load %arg5[%c0_36, %c0_37] : memref<1x32xf32, #tpu.memory_space<vmem>>, vector<1x32xf32>
      %61 = vector.broadcast %60 : vector<1x32xf32> to vector<2x32xf32>
      %62 = arith.addf %59, %61 : vector<2x32xf32>
      %c0_38 = arith.constant 0 : index
      %c0_39 = arith.constant 0 : index
      %63 = vector.load %arg11[%c0_38, %c0_39] : memref<2x32xf32, #tpu.memory_space<vmem>>, vector<2x32xf32>
      tpu.vector_store %arg11[%c0_38, %c0_39], %62 {strides = array<i32>} : memref<2x32xf32, #tpu.memory_space<vmem>>, vector<2x32xf32>,
      %cst_40 = arith.constant 0xFF800000 : f32
      %64 = vector.broadcast %cst_40 : f32 to vector<2x1xf32>
      %c0_41 = arith.constant 0 : index
      %c0_42 = arith.constant 0 : index
      %65 = vector.load %arg12[%c0_41, %c0_42] : memref<2x1xf32, #tpu.memory_space<vmem>>, vector<2x1xf32>
      tpu.vector_store %arg12[%c0_41, %c0_42], %64 {strides = array<i32>} : memref<2x1xf32, #tpu.memory_space<vmem>>, vector<2x1xf32>,
      %cst_43 = arith.constant 0.000000e+00 : f32
      %66 = vector.broadcast %cst_43 : f32 to vector<2x1xf32>
      %c0_44 = arith.constant 0 : index
      %c0_45 = arith.constant 0 : index
      %67 = vector.load %arg13[%c0_44, %c0_45] : memref<2x1xf32, #tpu.memory_space<vmem>>, vector<2x1xf32>
      tpu.vector_store %arg13[%c0_44, %c0_45], %66 {strides = array<i32>} : memref<2x1xf32, #tpu.memory_space<vmem>>, vector<2x1xf32>,
      %cst_46 = arith.constant 0.000000e+00 : f32
      %68 = vector.broadcast %cst_46 : f32 to vector<2x64xf32>
      %c0_47 = arith.constant 0 : index
      %c0_48 = arith.constant 0 : index
      %69 = vector.load %arg14[%c0_47, %c0_48] : memref<2x64xf32, #tpu.memory_space<vmem>>, vector<2x64xf32>
      tpu.vector_store %arg14[%c0_47, %c0_48], %68 {strides = array<i32>} : memref<2x64xf32, #tpu.memory_space<vmem>>, vector<2x64xf32>,
    } else {
    }
    %c0 = arith.constant 0 : index
    %c0_1 = arith.constant 0 : index
    %c0_2 = arith.constant 0 : index
    %3 = vector.load %arg3[%c0, %c0_1, %c0_2] : memref<2x8x64xf32, #tpu.memory_space<vmem>>, vector<2x8x64xf32>
    %4 = vector.shape_cast %3 : vector<2x8x64xf32> to vector<16x64xf32>
    %5 = arith.truncf %4 : vector<16x64xf32> to vector<16x64xbf16>
    %c0_3 = arith.constant 0 : index
    %c0_4 = arith.constant 0 : index
    %6 = vector.load %arg6[%c0_3, %c0_4] : memref<64x32xf32, #tpu.memory_space<vmem>>, vector<64x32xf32>
    %7 = arith.truncf %6 : vector<64x32xf32> to vector<64x32xbf16>
    %cst = arith.constant dense<0.000000e+00> : vector<16x32xf32>
    %8 = tpu.matmul %5, %7, %cst {dimension_numbers = #tpu.dot_dimension_numbers<[1], [0], [0], [1], [0, 0, 1, 1], [], []>} : vector<16x64xbf16>, vector<64x32xbf16>, vector<16x32xf32> -> vector<16x32xf32>
    %c0_5 = arith.constant 0 : index
    %c0_6 = arith.constant 0 : index
    %9 = vector.load %arg7[%c0_5, %c0_6] : memref<1x32xf32, #tpu.memory_space<vmem>>, vector<1x32xf32>
    %10 = vector.broadcast %9 : vector<1x32xf32> to vector<16x32xf32>
    %11 = arith.addf %8, %10 : vector<16x32xf32>
    %12 = vector.shape_cast %11 : vector<16x32xf32> to vector<2x8x32xf32>
    %c0_7 = arith.constant 0 : index
    %c0_8 = arith.constant 0 : index
    %13 = vector.load %arg11[%c0_7, %c0_8] : memref<2x32xf32, #tpu.memory_space<vmem>>, vector<2x32xf32>
    %14 = vector.shape_cast %13 : vector<2x32xf32> to vector<2x1x32xf32>
    %15 = vector.broadcast %14 : vector<2x1x32xf32> to vector<2x8x32xf32>
    %16 = arith.addf %12, %15 : vector<2x8x32xf32>
    %17 = math.tanh %16 : vector<2x8x32xf32>
    %c0_9 = arith.constant 0 : index
    %c0_10 = arith.constant 0 : index
    %18 = vector.load %arg8[%c0_9, %c0_10] : memref<1x32xf32, #tpu.memory_space<vmem>>, vector<1x32xf32>
    %19 = vector.shape_cast %18 : vector<1x32xf32> to vector<1x1x32xf32>
    %20 = vector.broadcast %19 : vector<1x1x32xf32> to vector<2x8x32xf32>
    %21 = arith.mulf %17, %20 : vector<2x8x32xf32>
    %cst_11 = arith.constant dense<0.000000e+00> : vector<2x8xf32>
    %22 = vector.multi_reduction <add>, %21, %cst_11 [2] : vector<2x8x32xf32> to vector<2x8xf32>
    %23 = arith.index_cast %arg1 : i32 to index
    %c0_12 = arith.constant 0 : index
    %c0_13 = arith.constant 0 : index
    %24 = vector.load %arg10[%23, %c0_12, %c0_13] : memref<1x2x8xf32, #tpu.memory_space<vmem>>, vector<1x2x8xf32>
    %25 = vector.shape_cast %24 : vector<1x2x8xf32> to vector<2x8xf32>
    %26 = vector.shape_cast %22 : vector<2x8xf32> to vector<1x2x8xf32>
    tpu.vector_store %arg10[%23, %c0_12, %c0_13], %26 {strides = array<i32>} : memref<1x2x8xf32, #tpu.memory_space<vmem>>, vector<1x2x8xf32>,
    %c0_14 = arith.constant 0 : index
    %c0_15 = arith.constant 0 : index
    %27 = vector.load %arg12[%c0_14, %c0_15] : memref<2x1xf32, #tpu.memory_space<vmem>>, vector<2x1xf32>
    %cst_16 = arith.constant dense<0xFF800000> : vector<2xf32>
    %28 = vector.multi_reduction <maximumf>, %22, %cst_16 [1] : vector<2x8xf32> to vector<2xf32>
    %29 = vector.shape_cast %28 : vector<2xf32> to vector<2x1xf32>
    %30 = arith.maximumf %27, %29 : vector<2x1xf32>
    %31 = arith.subf %27, %30 : vector<2x1xf32>
    %32 = math.exp %31 : vector<2x1xf32>
    %33 = vector.broadcast %30 : vector<2x1xf32> to vector<2x8xf32>
    %34 = arith.subf %22, %33 : vector<2x8xf32>
    %35 = math.exp %34 : vector<2x8xf32>
    %c0_17 = arith.constant 0 : index
    %c0_18 = arith.constant 0 : index
    %36 = vector.load %arg13[%c0_17, %c0_18] : memref<2x1xf32, #tpu.memory_space<vmem>>, vector<2x1xf32>
    %37 = arith.mulf %32, %36 : vector<2x1xf32>
    %cst_19 = arith.constant dense<0.000000e+00> : vector<2xf32>
    %38 = vector.multi_reduction <add>, %35, %cst_19 [1] : vector<2x8xf32> to vector<2xf32>
    %39 = vector.shape_cast %38 : vector<2xf32> to vector<2x1xf32>
    %40 = arith.addf %37, %39 : vector<2x1xf32>
    %c0_20 = arith.constant 0 : index
    %c0_21 = arith.constant 0 : index
    %41 = vector.load %arg13[%c0_20, %c0_21] : memref<2x1xf32, #tpu.memory_space<vmem>>, vector<2x1xf32>
    tpu.vector_store %arg13[%c0_20, %c0_21], %40 {strides = array<i32>} : memref<2x1xf32, #tpu.memory_space<vmem>>, vector<2x1xf32>,
    %c0_22 = arith.constant 0 : index
    %c0_23 = arith.constant 0 : index
    %42 = vector.load %arg14[%c0_22, %c0_23] : memref<2x64xf32, #tpu.memory_space<vmem>>, vector<2x64xf32>
    %43 = vector.broadcast %32 : vector<2x1xf32> to vector<2x64xf32>
    %44 = arith.mulf %43, %42 : vector<2x64xf32>
    %45 = vector.shape_cast %35 : vector<2x8xf32> to vector<2x8x1xf32>
    %46 = vector.broadcast %45 : vector<2x8x1xf32> to vector<2x8x64xf32>
    %47 = arith.mulf %46, %3 : vector<2x8x64xf32>
    %cst_24 = arith.constant dense<0.000000e+00> : vector<2x64xf32>
    %48 = vector.multi_reduction <add>, %47, %cst_24 [1] : vector<2x8x64xf32> to vector<2x64xf32>
    %49 = arith.addf %44, %48 : vector<2x64xf32>
    %c0_25 = arith.constant 0 : index
    %c0_26 = arith.constant 0 : index
    %50 = vector.load %arg14[%c0_25, %c0_26] : memref<2x64xf32, #tpu.memory_space<vmem>>, vector<2x64xf32>
    tpu.vector_store %arg14[%c0_25, %c0_26], %49 {strides = array<i32>} : memref<2x64xf32, #tpu.memory_space<vmem>>, vector<2x64xf32>,
    %c0_27 = arith.constant 0 : index
    %c0_28 = arith.constant 0 : index
    %51 = vector.load %arg12[%c0_27, %c0_28] : memref<2x1xf32, #tpu.memory_space<vmem>>, vector<2x1xf32>
    tpu.vector_store %arg12[%c0_27, %c0_28], %30 {strides = array<i32>} : memref<2x1xf32, #tpu.memory_space<vmem>>, vector<2x1xf32>,
    %c0_i32_29 = arith.constant 0 : i32
    %52 = arith.cmpi eq, %arg1, %c0_i32_29 : i32
    %53 = arith.extui %52 : i1 to i32
    %c0_i32_30 = arith.constant 0 : i32
    %54 = arith.cmpi ne, %53, %c0_i32_30 : i32
    scf.if %54 {
      %c0_31 = arith.constant 0 : index
      %c0_32 = arith.constant 0 : index
      %55 = vector.load %arg13[%c0_31, %c0_32] : memref<2x1xf32, #tpu.memory_space<vmem>>, vector<2x1xf32>
      %56 = tpu.reciprocal %55 : vector<2x1xf32> -> vector<2x1xf32>
      %c0_33 = arith.constant 0 : index
      %c0_34 = arith.constant 0 : index
      %57 = vector.load %arg14[%c0_33, %c0_34] : memref<2x64xf32, #tpu.memory_space<vmem>>, vector<2x64xf32>
      %58 = vector.broadcast %56 : vector<2x1xf32> to vector<2x64xf32>
      %59 = arith.mulf %57, %58 : vector<2x64xf32>
      %c0_35 = arith.constant 0 : index
      %c0_36 = arith.constant 0 : index
      %60 = vector.load %arg9[%c0_35, %c0_36] : memref<2x64xf32, #tpu.memory_space<vmem>>, vector<2x64xf32>
      tpu.vector_store %arg9[%c0_35, %c0_36], %59 {strides = array<i32>} : memref<2x64xf32, #tpu.memory_space<vmem>>, vector<2x64xf32>,
      %c0_37 = arith.constant 0 : index
      %c0_38 = arith.constant 0 : index
      %c0_39 = arith.constant 0 : index
      %61 = vector.load %arg10[%c0_37, %c0_38, %c0_39] : memref<1x2x8xf32, #tpu.memory_space<vmem>>, vector<1x2x8xf32>
      %c0_40 = arith.constant 0 : index
      %c0_41 = arith.constant 0 : index
      %62 = vector.load %arg12[%c0_40, %c0_41] : memref<2x1xf32, #tpu.memory_space<vmem>>, vector<2x1xf32>
      %63 = vector.shape_cast %62 : vector<2x1xf32> to vector<1x2x1xf32>
      %64 = vector.broadcast %63 : vector<1x2x1xf32> to vector<1x2x8xf32>
      %65 = arith.subf %61, %64 : vector<1x2x8xf32>
      %66 = math.exp %65 : vector<1x2x8xf32>
      %67 = vector.shape_cast %56 : vector<2x1xf32> to vector<1x2x1xf32>
      %68 = vector.broadcast %67 : vector<1x2x1xf32> to vector<1x2x8xf32>
      %69 = arith.mulf %66, %68 : vector<1x2x8xf32>
      %c0_42 = arith.constant 0 : index
      %c0_43 = arith.constant 0 : index
      %c0_44 = arith.constant 0 : index
      %70 = vector.load %arg10[%c0_42, %c0_43, %c0_44] : memref<1x2x8xf32, #tpu.memory_space<vmem>>, vector<1x2x8xf32>
      tpu.vector_store %arg10[%c0_42, %c0_43, %c0_44], %69 {strides = array<i32>} : memref<1x2x8xf32, #tpu.memory_space<vmem>>, vector<1x2x8xf32>,
    } else {
    }
    return
  }
  func.func @transform_0(%arg0: i32, %arg1: i32) -> (i32, i32) {
    %c0_i32 = arith.constant 0 : i32
    %c0_i32_0 = arith.constant 0 : i32
    return %arg0, %c0_i32 : i32, i32
  }
  func.func @transform_1(%arg0: i32, %arg1: i32) -> (i32, i32, i32) {
    %c0_i32 = arith.constant 0 : i32
    %c0_i32_0 = arith.constant 0 : i32
    return %arg0, %arg1, %c0_i32 : i32, i32, i32
  }
  func.func @transform_2(%arg0: i32, %arg1: i32) -> (i32, i32) {
    %c0_i32 = arith.constant 0 : i32
    %c0_i32_0 = arith.constant 0 : i32
    %c0_i32_1 = arith.constant 0 : i32
    return %c0_i32, %c0_i32_0 : i32, i32
  }
  func.func @transform_3(%arg0: i32, %arg1: i32) -> (i32, i32) {
    %c0_i32 = arith.constant 0 : i32
    %c0_i32_0 = arith.constant 0 : i32
    %c0_i32_1 = arith.constant 0 : i32
    return %c0_i32, %c0_i32_0 : i32, i32
  }
  func.func @transform_4(%arg0: i32, %arg1: i32) -> (i32, i32) {
    %c0_i32 = arith.constant 0 : i32
    %c0_i32_0 = arith.constant 0 : i32
    %c0_i32_1 = arith.constant 0 : i32
    return %c0_i32, %c0_i32_0 : i32, i32
  }
  func.func @transform_5(%arg0: i32, %arg1: i32) -> (i32, i32) {
    %c0_i32 = arith.constant 0 : i32
    %c0_i32_0 = arith.constant 0 : i32
    %c0_i32_1 = arith.constant 0 : i32
    return %c0_i32, %c0_i32_0 : i32, i32
  }
  func.func @transform_6(%arg0: i32, %arg1: i32) -> (i32, i32) {
    %c0_i32 = arith.constant 0 : i32
    %c0_i32_0 = arith.constant 0 : i32
    %c0_i32_1 = arith.constant 0 : i32
    return %c0_i32, %c0_i32_0 : i32, i32
  }
  func.func @transform_7(%arg0: i32, %arg1: i32) -> (i32, i32) {
    %c0_i32 = arith.constant 0 : i32
    %c0_i32_0 = arith.constant 0 : i32
    return %arg0, %c0_i32 : i32, i32
  }
  func.func @transform_8(%arg0: i32, %arg1: i32) -> (i32, i32, i32) {
    %c0_i32 = arith.constant 0 : i32
    %c0_i32_0 = arith.constant 0 : i32
    %c0_i32_1 = arith.constant 0 : i32
    return %c0_i32, %arg0, %c0_i32_0 : i32, i32, i32
  }
}

module attributes {stable_mosaic.version = 11 : i64} {
  func.func @_attention_kernel(%arg0: i32, %arg1: i32, %arg2: memref<2x64xf32, #tpu.memory_space<vmem>>, %arg3: memref<2x8x64xf32, #tpu.memory_space<vmem>>, %arg4: memref<64x32xf32, #tpu.memory_space<vmem>>, %arg5: memref<1x32xf32, #tpu.memory_space<vmem>>, %arg6: memref<64x32xf32, #tpu.memory_space<vmem>>, %arg7: memref<1x32xf32, #tpu.memory_space<vmem>>, %arg8: memref<1x32xf32, #tpu.memory_space<vmem>>, %arg9: memref<2x64xf32, #tpu.memory_space<vmem>>, %arg10: memref<1x2x8xf32, #tpu.memory_space<vmem>>, %arg11: memref<2x32xf32, #tpu.memory_space<vmem>>, %arg12: memref<2x1xf32, #tpu.memory_space<vmem>>, %arg13: memref<2x1xf32, #tpu.memory_space<vmem>>, %arg14: memref<2x64xf32, #tpu.memory_space<vmem>>) attributes {dimension_semantics = [#tpu.dimension_semantics<parallel>, #tpu.dimension_semantics<arbitrary>], iteration_bounds = array<i64: 1, 1>, scalar_prefetch = 0 : i64, scratch_operands = 4 : i64, tpu.core_type = #tpu.core_type<tc>, window_params = [{transform_indices = @transform_0, window_bounds = array<i64: 2, 64>}, {transform_indices = @transform_1, window_bounds = array<i64: 2, 8, 64>}, {pipeline_mode = #tpu.pipeline_mode<synchronous>, transform_indices = @transform_2, window_bounds = array<i64: 64, 32>}, {pipeline_mode = #tpu.pipeline_mode<synchronous>, transform_indices = @transform_3, window_bounds = array<i64: 1, 32>}, {pipeline_mode = #tpu.pipeline_mode<synchronous>, transform_indices = @transform_4, window_bounds = array<i64: 64, 32>}, {pipeline_mode = #tpu.pipeline_mode<synchronous>, transform_indices = @transform_5, window_bounds = array<i64: 1, 32>}, {pipeline_mode = #tpu.pipeline_mode<synchronous>, transform_indices = @transform_6, window_bounds = array<i64: 1, 32>}, {transform_indices = @transform_7, window_bounds = array<i64: 2, 64>}, {transform_indices = @transform_8, window_bounds = array<i64: 1, 2, 8>}]} {
    %c0_i32 = arith.constant 0 : i32
    %0 = arith.cmpi eq, %arg1, %c0_i32 : i32
    %1 = arith.extui %0 : i1 to i32
    %c0_i32_0 = arith.constant 0 : i32
    %2 = arith.cmpi ne, %1, %c0_i32_0 : i32
    scf.if %2 {
      %c0_31 = arith.constant 0 : index
      %c0_32 = arith.constant 0 : index
      %55 = vector.load %arg2[%c0_31, %c0_32] : memref<2x64xf32, #tpu.memory_space<vmem>>, vector<2x64xf32>
      %56 = arith.truncf %55 : vector<2x64xf32> to vector<2x64xbf16>
      %c0_33 = arith.constant 0 : index
      %c0_34 = arith.constant 0 : index
      %57 = vector.load %arg4[%c0_33, %c0_34] : memref<64x32xf32, #tpu.memory_space<vmem>>, vector<64x32xf32>
      %58 = arith.truncf %57 : vector<64x32xf32> to vector<64x32xbf16>
      %cst_35 = arith.constant dense<0.000000e+00> : vector<2x32xf32>
      %59 = tpu.matmul %56, %58, %cst_35 {dimension_numbers = #tpu.dot_dimension_numbers<[1], [0], [0], [1], [0, 0, 1, 1], [], []>} : vector<2x64xbf16>, vector<64x32xbf16>, vector<2x32xf32> -> vector<2x32xf32>
      %c0_36 = arith.constant 0 : index
      %c0_37 = arith.constant 0 : index
      %60 = vector.load %arg5[%c0_36, %c0_37] : memref<1x32xf32, #tpu.memory_space<vmem>>, vector<1x32xf32>
      %61 = vector.broadcast %60 : vector<1x32xf32> to vector<2x32xf32>
      %62 = arith.addf %59, %61 : vector<2x32xf32>
      %c0_38 = arith.constant 0 : index
      %c0_39 = arith.constant 0 : index
      %63 = vector.load %arg11[%c0_38, %c0_39] : memref<2x32xf32, #tpu.memory_space<vmem>>, vector<2x32xf32>
      tpu.vector_store %arg11[%c0_38, %c0_39], %62 {strides = array<i32>} : memref<2x32xf32, #tpu.memory_space<vmem>>, vector<2x32xf32>,
      %cst_40 = arith.constant 0xFF800000 : f32
      %64 = vector.broadcast %cst_40 : f32 to vector<2x1xf32>
      %c0_41 = arith.constant 0 : index
      %c0_42 = arith.constant 0 : index
      %65 = vector.load %arg12[%c0_41, %c0_42] : memref<2x1xf32, #tpu.memory_space<vmem>>, vector<2x1xf32>
      tpu.vector_store %arg12[%c0_41, %c0_42], %64 {strides = array<i32>} : memref<2x1xf32, #tpu.memory_space<vmem>>, vector<2x1xf32>,
      %cst_43 = arith.constant 0.000000e+00 : f32
      %66 = vector.broadcast %cst_43 : f32 to vector<2x1xf32>
      %c0_44 = arith.constant 0 : index
      %c0_45 = arith.constant 0 : index
      %67 = vector.load %arg13[%c0_44, %c0_45] : memref<2x1xf32, #tpu.memory_space<vmem>>, vector<2x1xf32>
      tpu.vector_store %arg13[%c0_44, %c0_45], %66 {strides = array<i32>} : memref<2x1xf32, #tpu.memory_space<vmem>>, vector<2x1xf32>,
      %cst_46 = arith.constant 0.000000e+00 : f32
      %68 = vector.broadcast %cst_46 : f32 to vector<2x64xf32>
      %c0_47 = arith.constant 0 : index
      %c0_48 = arith.constant 0 : index
      %69 = vector.load %arg14[%c0_47, %c0_48] : memref<2x64xf32, #tpu.memory_space<vmem>>, vector<2x64xf32>
      tpu.vector_store %arg14[%c0_47, %c0_48], %68 {strides = array<i32>} : memref<2x64xf32, #tpu.memory_space<vmem>>, vector<2x64xf32>,
    } else {
    }
    %c0 = arith.constant 0 : index
    %c0_1 = arith.constant 0 : index
    %c0_2 = arith.constant 0 : index
    %3 = vector.load %arg3[%c0, %c0_1, %c0_2] : memref<2x8x64xf32, #tpu.memory_space<vmem>>, vector<2x8x64xf32>
    %4 = vector.shape_cast %3 : vector<2x8x64xf32> to vector<16x64xf32>
    %5 = arith.truncf %4 : vector<16x64xf32> to vector<16x64xbf16>
    %c0_3 = arith.constant 0 : index
    %c0_4 = arith.constant 0 : index
    %6 = vector.load %arg6[%c0_3, %c0_4] : memref<64x32xf32, #tpu.memory_space<vmem>>, vector<64x32xf32>
    %7 = arith.truncf %6 : vector<64x32xf32> to vector<64x32xbf16>
    %cst = arith.constant dense<0.000000e+00> : vector<16x32xf32>
    %8 = tpu.matmul %5, %7, %cst {dimension_numbers = #tpu.dot_dimension_numbers<[1], [0], [0], [1], [0, 0, 1, 1], [], []>} : vector<16x64xbf16>, vector<64x32xbf16>, vector<16x32xf32> -> vector<16x32xf32>
    %c0_5 = arith.constant 0 : index
    %c0_6 = arith.constant 0 : index
    %9 = vector.load %arg7[%c0_5, %c0_6] : memref<1x32xf32, #tpu.memory_space<vmem>>, vector<1x32xf32>
    %10 = vector.broadcast %9 : vector<1x32xf32> to vector<16x32xf32>
    %11 = arith.addf %8, %10 : vector<16x32xf32>
    %12 = vector.shape_cast %11 : vector<16x32xf32> to vector<2x8x32xf32>
    %c0_7 = arith.constant 0 : index
    %c0_8 = arith.constant 0 : index
    %13 = vector.load %arg11[%c0_7, %c0_8] : memref<2x32xf32, #tpu.memory_space<vmem>>, vector<2x32xf32>
    %14 = vector.shape_cast %13 : vector<2x32xf32> to vector<2x1x32xf32>
    %15 = vector.broadcast %14 : vector<2x1x32xf32> to vector<2x8x32xf32>
    %16 = arith.addf %12, %15 : vector<2x8x32xf32>
    %17 = math.tanh %16 : vector<2x8x32xf32>
    %c0_9 = arith.constant 0 : index
    %c0_10 = arith.constant 0 : index
    %18 = vector.load %arg8[%c0_9, %c0_10] : memref<1x32xf32, #tpu.memory_space<vmem>>, vector<1x32xf32>
    %19 = vector.shape_cast %18 : vector<1x32xf32> to vector<1x1x32xf32>
    %20 = vector.broadcast %19 : vector<1x1x32xf32> to vector<2x8x32xf32>
    %21 = arith.mulf %17, %20 : vector<2x8x32xf32>
    %cst_11 = arith.constant dense<0.000000e+00> : vector<2x8xf32>
    %22 = vector.multi_reduction <add>, %21, %cst_11 [2] : vector<2x8x32xf32> to vector<2x8xf32>
    %23 = arith.index_cast %arg1 : i32 to index
    %c0_12 = arith.constant 0 : index
    %c0_13 = arith.constant 0 : index
    %24 = vector.load %arg10[%23, %c0_12, %c0_13] : memref<1x2x8xf32, #tpu.memory_space<vmem>>, vector<1x2x8xf32>
    %25 = vector.shape_cast %24 : vector<1x2x8xf32> to vector<2x8xf32>
    %26 = vector.shape_cast %22 : vector<2x8xf32> to vector<1x2x8xf32>
    tpu.vector_store %arg10[%23, %c0_12, %c0_13], %26 {strides = array<i32>} : memref<1x2x8xf32, #tpu.memory_space<vmem>>, vector<1x2x8xf32>,
    %c0_14 = arith.constant 0 : index
    %c0_15 = arith.constant 0 : index
    %27 = vector.load %arg12[%c0_14, %c0_15] : memref<2x1xf32, #tpu.memory_space<vmem>>, vector<2x1xf32>
    %cst_16 = arith.constant dense<0xFF800000> : vector<2xf32>
    %28 = vector.multi_reduction <maximumf>, %22, %cst_16 [1] : vector<2x8xf32> to vector<2xf32>
    %29 = vector.shape_cast %28 : vector<2xf32> to vector<2x1xf32>
    %30 = arith.maximumf %27, %29 : vector<2x1xf32>
    %31 = arith.subf %27, %30 : vector<2x1xf32>
    %32 = math.exp %31 : vector<2x1xf32>
    %33 = vector.broadcast %30 : vector<2x1xf32> to vector<2x8xf32>
    %34 = arith.subf %22, %33 : vector<2x8xf32>
    %35 = math.exp %34 : vector<2x8xf32>
    %c0_17 = arith.constant 0 : index
    %c0_18 = arith.constant 0 : index
    %36 = vector.load %arg13[%c0_17, %c0_18] : memref<2x1xf32, #tpu.memory_space<vmem>>, vector<2x1xf32>
    %37 = arith.mulf %32, %36 : vector<2x1xf32>
    %cst_19 = arith.constant dense<0.000000e+00> : vector<2xf32>
    %38 = vector.multi_reduction <add>, %35, %cst_19 [1] : vector<2x8xf32> to vector<2xf32>
    %39 = vector.shape_cast %38 : vector<2xf32> to vector<2x1xf32>
    %40 = arith.addf %37, %39 : vector<2x1xf32>
    %c0_20 = arith.constant 0 : index
    %c0_21 = arith.constant 0 : index
    %41 = vector.load %arg13[%c0_20, %c0_21] : memref<2x1xf32, #tpu.memory_space<vmem>>, vector<2x1xf32>
    tpu.vector_store %arg13[%c0_20, %c0_21], %40 {strides = array<i32>} : memref<2x1xf32, #tpu.memory_space<vmem>>, vector<2x1xf32>,
    %c0_22 = arith.constant 0 : index
    %c0_23 = arith.constant 0 : index
    %42 = vector.load %arg14[%c0_22, %c0_23] : memref<2x64xf32, #tpu.memory_space<vmem>>, vector<2x64xf32>
    %43 = vector.broadcast %32 : vector<2x1xf32> to vector<2x64xf32>
    %44 = arith.mulf %43, %42 : vector<2x64xf32>
    %45 = vector.shape_cast %35 : vector<2x8xf32> to vector<2x8x1xf32>
    %46 = vector.broadcast %45 : vector<2x8x1xf32> to vector<2x8x64xf32>
    %47 = arith.mulf %46, %3 : vector<2x8x64xf32>
    %cst_24 = arith.constant dense<0.000000e+00> : vector<2x64xf32>
    %48 = vector.multi_reduction <add>, %47, %cst_24 [1] : vector<2x8x64xf32> to vector<2x64xf32>
    %49 = arith.addf %44, %48 : vector<2x64xf32>
    %c0_25 = arith.constant 0 : index
    %c0_26 = arith.constant 0 : index
    %50 = vector.load %arg14[%c0_25, %c0_26] : memref<2x64xf32, #tpu.memory_space<vmem>>, vector<2x64xf32>
    tpu.vector_store %arg14[%c0_25, %c0_26], %49 {strides = array<i32>} : memref<2x64xf32, #tpu.memory_space<vmem>>, vector<2x64xf32>,
    %c0_27 = arith.constant 0 : index
    %c0_28 = arith.constant 0 : index
    %51 = vector.load %arg12[%c0_27, %c0_28] : memref<2x1xf32, #tpu.memory_space<vmem>>, vector<2x1xf32>
    tpu.vector_store %arg12[%c0_27, %c0_28], %30 {strides = array<i32>} : memref<2x1xf32, #tpu.memory_space<vmem>>, vector<2x1xf32>,
    %c0_i32_29 = arith.constant 0 : i32
    %52 = arith.cmpi eq, %arg1, %c0_i32_29 : i32
    %53 = arith.extui %52 : i1 to i32
    %c0_i32_30 = arith.constant 0 : i32
    %54 = arith.cmpi ne, %53, %c0_i32_30 : i32
    scf.if %54 {
      %c0_31 = arith.constant 0 : index
      %c0_32 = arith.constant 0 : index
      %55 = vector.load %arg13[%c0_31, %c0_32] : memref<2x1xf32, #tpu.memory_space<vmem>>, vector<2x1xf32>
      %56 = tpu.reciprocal %55 : vector<2x1xf32> -> vector<2x1xf32>
      %c0_33 = arith.constant 0 : index
      %c0_34 = arith.constant 0 : index
      %57 = vector.load %arg14[%c0_33, %c0_34] : memref<2x64xf32, #tpu.memory_space<vmem>>, vector<2x64xf32>
      %58 = vector.broadcast %56 : vector<2x1xf32> to vector<2x64xf32>
      %59 = arith.mulf %57, %58 : vector<2x64xf32>
      %c0_35 = arith.constant 0 : index
      %c0_36 = arith.constant 0 : index
      %60 = vector.load %arg9[%c0_35, %c0_36] : memref<2x64xf32, #tpu.memory_space<vmem>>, vector<2x64xf32>
      tpu.vector_store %arg9[%c0_35, %c0_36], %59 {strides = array<i32>} : memref<2x64xf32, #tpu.memory_space<vmem>>, vector<2x64xf32>,
      %c0_37 = arith.constant 0 : index
      %c0_38 = arith.constant 0 : index
      %c0_39 = arith.constant 0 : index
      %61 = vector.load %arg10[%c0_37, %c0_38, %c0_39] : memref<1x2x8xf32, #tpu.memory_space<vmem>>, vector<1x2x8xf32>
      %c0_40 = arith.constant 0 : index
      %c0_41 = arith.constant 0 : index
      %62 = vector.load %arg12[%c0_40, %c0_41] : memref<2x1xf32, #tpu.memory_space<vmem>>, vector<2x1xf32>
      %63 = vector.shape_cast %62 : vector<2x1xf32> to vector<1x2x1xf32>
      %64 = vector.broadcast %63 : vector<1x2x1xf32> to vector<1x2x8xf32>
      %65 = arith.subf %61, %64 : vector<1x2x8xf32>
      %66 = math.exp %65 : vector<1x2x8xf32>
      %67 = vector.shape_cast %56 : vector<2x1xf32> to vector<1x2x1xf32>
      %68 = vector.broadcast %67 : vector<1x2x1xf32> to vector<1x2x8xf32>
      %69 = arith.mulf %66, %68 : vector<1x2x8xf32>
      %c0_42 = arith.constant 0 : index
      %c0_43 = arith.constant 0 : index
      %c0_44 = arith.constant 0 : index
      %70 = vector.load %arg10[%c0_42, %c0_43, %c0_44] : memref<1x2x8xf32, #tpu.memory_space<vmem>>, vector<1x2x8xf32>
      tpu.vector_store %arg10[%c0_42, %c0_43, %c0_44], %69 {strides = array<i32>} : memref<1x2x8xf32, #tpu.memory_space<vmem>>, vector<1x2x8xf32>,
    } else {
    }
    return
  }
  func.func @transform_0(%arg0: i32, %arg1: i32) -> (i32, i32) {
    %c0_i32 = arith.constant 0 : i32
    %c0_i32_0 = arith.constant 0 : i32
    return %arg0, %c0_i32 : i32, i32
  }
  func.func @transform_1(%arg0: i32, %arg1: i32) -> (i32, i32, i32) {
    %c0_i32 = arith.constant 0 : i32
    %c0_i32_0 = arith.constant 0 : i32
    return %arg0, %arg1, %c0_i32 : i32, i32, i32
  }
  func.func @transform_2(%arg0: i32, %arg1: i32) -> (i32, i32) {
    %c0_i32 = arith.constant 0 : i32
    %c0_i32_0 = arith.constant 0 : i32
    %c0_i32_1 = arith.constant 0 : i32
    return %c0_i32, %c0_i32_0 : i32, i32
  }
  func.func @transform_3(%arg0: i32, %arg1: i32) -> (i32, i32) {
    %c0_i32 = arith.constant 0 : i32
    %c0_i32_0 = arith.constant 0 : i32
    %c0_i32_1 = arith.constant 0 : i32
    return %c0_i32, %c0_i32_0 : i32, i32
  }
  func.func @transform_4(%arg0: i32, %arg1: i32) -> (i32, i32) {
    %c0_i32 = arith.constant 0 : i32
    %c0_i32_0 = arith.constant 0 : i32
    %c0_i32_1 = arith.constant 0 : i32
    return %c0_i32, %c0_i32_0 : i32, i32
  }
  func.func @transform_5(%arg0: i32, %arg1: i32) -> (i32, i32) {
    %c0_i32 = arith.constant 0 : i32
    %c0_i32_0 = arith.constant 0 : i32
    %c0_i32_1 = arith.constant 0 : i32
    return %c0_i32, %c0_i32_0 : i32, i32
  }
  func.func @transform_6(%arg0: i32, %arg1: i32) -> (i32, i32) {
    %c0_i32 = arith.constant 0 : i32
    %c0_i32_0 = arith.constant 0 : i32
    %c0_i32_1 = arith.constant 0 : i32
    return %c0_i32, %c0_i32_0 : i32, i32
  }
  func.func @transform_7(%arg0: i32, %arg1: i32) -> (i32, i32) {
    %c0_i32 = arith.constant 0 : i32
    %c0_i32_0 = arith.constant 0 : i32
    return %arg0, %c0_i32 : i32, i32
  }
  func.func @transform_8(%arg0: i32, %arg1: i32) -> (i32, i32, i32) {
    %c0_i32 = arith.constant 0 : i32
    %c0_i32_0 = arith.constant 0 : i32
    %c0_i32_1 = arith.constant 0 : i32
    return %c0_i32, %arg0, %c0_i32_0 : i32, i32, i32
  }
}

</mosaic_0001>

<llo_original>
// kernel: tpu_custom_call.1
$region0: #{tpu_custom_call.1}
  #allocation0 [shape = 'u32[]', space=smem, size = 0x4, offset = 0x4, fixed_abs, tag = 'smem constant byte address 0x4 - core index']
  #allocation1 [shape = 'u32[144,128]{1,0:T(1,128)}', space=vmem, size = 0x12000, scoped, tag = 'internal scratch']
  #allocation2 [shape = 'f32[2,32]{1,0:T(2,128)}', space=vmem, size = 0x400, scoped, tag = 'scratch operand']
  #allocation3 [shape = 'f32[2,1]{1,0:T(2,128)}', space=vmem, size = 0x400, scoped, tag = 'scratch operand']
  #allocation4 [shape = 'f32[2,1]{1,0:T(2,128)}', space=vmem, size = 0x400, scoped, tag = 'scratch operand']
  #allocation5 [shape = 'f32[2,64]{1,0:T(2,128)}', space=vmem, size = 0x400, scoped, tag = 'scratch operand']
  %s0 = inlined_call_operand.vmem [shape: f32[2,64], index: 0, kind: input, shape index: {}]
  %s1 = inlined_call_operand.vmem [shape: f32[2,8,64], index: 1, kind: input, shape index: {}]
  %s2 = inlined_call_operand.vmem [shape: f32[64,32], index: 2, kind: input, shape index: {}]
  %s3 = inlined_call_operand.vmem [shape: f32[1,32], index: 3, kind: input, shape index: {}]
  %s4 = inlined_call_operand.vmem [shape: f32[64,32], index: 4, kind: input, shape index: {}]
  %s5 = inlined_call_operand.vmem [shape: f32[1,32], index: 5, kind: input, shape index: {}]
  %s6 = inlined_call_operand.vmem [shape: f32[1,32], index: 6, kind: input, shape index: {}]
  %s7 = inlined_call_operand.hbm [shape: f32[2,64], index: 7, kind: output, shape index: {0}]
  %s8 = inlined_call_operand.hbm [shape: f32[1,2,8], index: 8, kind: output, shape index: {1}]
  %9 = xla_tuple %s7, %s8
  %s10 = sld [smem:[#allocation0]]
  $region54: #{tpu_custom_call.1} parent=0
    _
  %s12 = ssub.s32 1, %s10
  %s13 = scalar_select 0, %s12, %s10
  $region1: #{tpu_custom_call.1} parent=0
    #allocation6 [shape = 'u8[1024]{0}', space=vmem, size = 0x400, scoped, tag = 'output window, operand 0, single buffered']
    #allocation7 [shape = 's32[1]{0}', space=sflag, size = 0x4, scoped, tag = 'scoped memory for tpu_custom_call.1']
    #allocation8 [shape = 'u8[1024]{0}', space=vmem, size = 0x400, scoped, tag = 'output window, operand 1, single buffered']
    #allocation9 [shape = 's32[1]{0}', space=sflag, size = 0x4, scoped, tag = 'scoped memory for tpu_custom_call.1']
    %14 = vsyncpa [#allocation7], 0
    %15 = vsyncpa [#allocation9], 0
    // Predicated region
    $region2: #{tpu_custom_call.1} parent=1 // pred_check
      _
    $region3: #{tpu_custom_call.1} parent=1 // pred_check_branch
      %17 = sbr.rel (0) target = $region5
    $region4: #{tpu_custom_call.1} parent=1 // pred_region
      _
    $region5: #{tpu_custom_call.1} parent=1 // pred_fallthru
      _
    // Predicated region
    $region6: #{tpu_custom_call.1} parent=1 // pred_check
      _
    $region7: #{tpu_custom_call.1} parent=1 // pred_check_branch
      %19 = sbr.rel (0) target = $region9
    $region8: #{tpu_custom_call.1} parent=1 // pred_region
      _
    $region9: #{tpu_custom_call.1} parent=1 // pred_fallthru
      _
    // Predicated region
    $region10: #{tpu_custom_call.1} parent=1 // pred_check
      _
    $region11: #{tpu_custom_call.1} parent=1 // pred_check_branch
      %21 = sbr.rel (0) target = $region13
    $region12: #{tpu_custom_call.1} parent=1 // pred_region
      _
    $region13: #{tpu_custom_call.1} parent=1 // pred_fallthru
      _
    // Predicated region
    $region14: #{tpu_custom_call.1} parent=1 // pred_check
      _
    $region15: #{tpu_custom_call.1} parent=1 // pred_check_branch
      %23 = sbr.rel (0) target = $region17
    $region16: #{tpu_custom_call.1} parent=1 // pred_region
      _
    $region17: #{tpu_custom_call.1} parent=1 // pred_fallthru
      _
    // Predicated region
    $region18: #{tpu_custom_call.1} parent=1 // pred_check
      _
    $region19: #{tpu_custom_call.1} parent=1 // pred_check_branch
      %25 = sbr.rel (0) target = $region21
    $region20: #{tpu_custom_call.1} parent=1 // pred_region
      _
    $region21: #{tpu_custom_call.1} parent=1 // pred_fallthru
      _
    // Predicated region
    $region22: #{tpu_custom_call.1} parent=1 // pred_check
      _
    $region23: #{tpu_custom_call.1} parent=1 // pred_check_branch
      %27 = sbr.rel (0) target = $region25
    $region24: #{tpu_custom_call.1} parent=1 // pred_region
      _
    $region25: #{tpu_custom_call.1} parent=1 // pred_fallthru
      _
    // Predicated region
    $region26: #{tpu_custom_call.1} parent=1 // pred_check
      _
    $region27: #{tpu_custom_call.1} parent=1 // pred_check_branch
      %29 = sbr.rel (0) target = $region29
    $region28: #{tpu_custom_call.1} parent=1 // pred_region
      _
    $region29: #{tpu_custom_call.1} parent=1 // pred_fallthru
      _
    %p31 = scmp.eq.s32.totalorder 0, 0
    // Predicated region
    $region30: #{tpu_custom_call.1} parent=1 // pred_check
      %p32 = pneg %p31
    $region31: #{tpu_custom_call.1} parent=1 // pred_check_branch
      %34 = sbr.rel (%p32) target = $region33
    $region32: #{tpu_custom_call.1} parent=1 // pred_region
      %v35 = vld [vmem:[%s0] sm:$0x3]
      %v36 = vpack.c.bf16 %v35, %v35
      %v37 = vld [vmem:[%s2] sm:$0xff]
      %v38 = vld [vmem:[%s2 + $0x8] sm:$0xff]
      %v39 = vld [vmem:[%s2 + $0x10] sm:$0xff]
      %v40 = vld [vmem:[%s2 + $0x18] sm:$0xff]
      %v41 = vld [vmem:[%s2 + $0x20] sm:$0xff]
      %v42 = vld [vmem:[%s2 + $0x28] sm:$0xff]
      %v43 = vld [vmem:[%s2 + $0x30] sm:$0xff]
      %v44 = vld [vmem:[%s2 + $0x38] sm:$0xff]
      %v45 = vpack.c.bf16 %v38, %v37
      %v46 = vpack.c.bf16 %v40, %v39
      %v47 = vpack.c.bf16 %v42, %v41
      %v48 = vpack.c.bf16 %v44, %v43
      %v49 = vld [vmem:[%s3] sm:$0x1]
      %v51 = vlaneseq
      %v52 = vshrl.u32 %v51, 7
      %v53 = vsub.s32 0, %v52
      %v54 = vrot.slane %v49, %v53
      %vm56 = vcmask 523264
      %v58 = vsel %vm56, %v36, 0
      %60 = vmatprep.subr.bf16.mxu0 0
      %61 = vmatpush1.bf16.msra.mxu0 %v45
      %62 = vmatprep.subr.bf16.mxu0 0
      %63 = vmatpush1.bf16.msra.mxu0 %v46
      %64 = vmatprep.subr.bf16.mxu0 0
      %65 = vmatpush1.bf16.msra.mxu0 %v47
      %66 = vmatprep.subr.bf16.mxu0 0
      %67 = vmatpush1.bf16.msra.mxu0 %v48
      %68 = vmatprep.subr.bf16.mxu0 0
      %69 = vmatpush1.bf16.msra.mxu0 0
      %70 = vmatprep.subr.bf16.mxu0 0
      %71 = vmatpush1.bf16.msra.mxu0 0
      %72 = vmatprep.subr.bf16.mxu0 0
      %73 = vmatpush1.bf16.msra.mxu0 0
      %74 = vmatprep.subr.bf16.mxu0 0
      %75 = vmatpush1.bf16.msra.mxu0 0
      %76 = vmatprep.subr.bf16.mxu0 0
      %77 = vmatpush1.bf16.msra.mxu0 0
      %78 = vmatprep.subr.bf16.mxu0 0
      %79 = vmatpush1.bf16.msra.mxu0 0
      %80 = vmatprep.subr.bf16.mxu0 0
      %81 = vmatpush1.bf16.msra.mxu0 0
      %82 = vmatprep.subr.bf16.mxu0 0
      %83 = vmatpush1.bf16.msra.mxu0 0
      %84 = vmatprep.subr.bf16.mxu0 0
      %85 = vmatpush1.bf16.msra.mxu0 0
      %86 = vmatprep.subr.bf16.mxu0 0
      %87 = vmatpush1.bf16.msra.mxu0 0
      %88 = vmatprep.subr.bf16.mxu0 0
      %89 = vmatpush1.bf16.msra.mxu0 0
      %90 = vmatprep.subr.bf16.mxu0 0
      %91 = vmatpush1.bf16.msra.mxu0 0
      %92 = vmatprep.mubr.bf16.mxu0 0
      %93 = vmatmul.mubr.bf16.gmra.mrb[0].mxu0 %v58
      %v94 = vpop.f32.mrb[0].mxu0
      %v95 = vadd.f32 %v54, %v94
      %v96 = vpop.f32.mrb[0].mxu0
      %v97 = vpop.f32.mrb[0].mxu0
      %v98 = vpop.f32.mrb[0].mxu0
      %99 = vdwg.mxu0
      %vm100 = vcmask 254976
      %101 = vst.msk [vmem:[#allocation2] sm:$0x3] %vm100, %v95
      %vm102 = vcmask 1024
      %103 = vst.msk [vmem:[#allocation3] sm:$0x3] %vm102, -inf
      %104 = vst.msk [vmem:[#allocation4] sm:$0x3] %vm102, 0.0
      %vm105 = vcmask 517120
      %106 = vst.msk [vmem:[#allocation5] sm:$0x3] %vm105, 0.0
    $region33: #{tpu_custom_call.1} parent=1 // pred_fallthru
      _
    %v107 = vld [vmem:[%s1] sm:$0xff]
    %v108 = vld [vmem:[%s1 + $0x8] sm:$0xff]
    %v109 = vpack.c.bf16 %v108, %v107
    %v110 = vld [vmem:[%s4] sm:$0xff]
    %v111 = vld [vmem:[%s4 + $0x8] sm:$0xff]
    %v112 = vld [vmem:[%s4 + $0x10] sm:$0xff]
    %v113 = vld [vmem:[%s4 + $0x18] sm:$0xff]
    %v114 = vld [vmem:[%s4 + $0x20] sm:$0xff]
    %v115 = vld [vmem:[%s4 + $0x28] sm:$0xff]
    %v116 = vld [vmem:[%s4 + $0x30] sm:$0xff]
    %v117 = vld [vmem:[%s4 + $0x38] sm:$0xff]
    %v118 = vpack.c.bf16 %v111, %v110
    %v119 = vpack.c.bf16 %v113, %v112
    %v120 = vpack.c.bf16 %v115, %v114
    %v121 = vpack.c.bf16 %v117, %v116
    %v122 = vld [vmem:[%s5] sm:$0x1]
    %v124 = vlaneseq
    %v125 = vshrl.u32 %v124, 7
    %v126 = vsub.s32 0, %v125
    %v127 = vrot.slane %v122, %v126
    %vm129 = vcmask 523264
    %v131 = vsel %vm129, %v109, 0
    %133 = vmatprep.subr.bf16.mxu0 0
    %134 = vmatpush1.bf16.msra.mxu0 %v118
    %135 = vmatprep.subr.bf16.mxu0 0
    %136 = vmatpush1.bf16.msra.mxu0 %v119
    %137 = vmatprep.subr.bf16.mxu0 0
    %138 = vmatpush1.bf16.msra.mxu0 %v120
    %139 = vmatprep.subr.bf16.mxu0 0
    %140 = vmatpush1.bf16.msra.mxu0 %v121
    %141 = vmatprep.subr.bf16.mxu0 0
    %142 = vmatpush1.bf16.msra.mxu0 0
    %143 = vmatprep.subr.bf16.mxu0 0
    %144 = vmatpush1.bf16.msra.mxu0 0
    %145 = vmatprep.subr.bf16.mxu0 0
    %146 = vmatpush1.bf16.msra.mxu0 0
    %147 = vmatprep.subr.bf16.mxu0 0
    %148 = vmatpush1.bf16.msra.mxu0 0
    %149 = vmatprep.subr.bf16.mxu0 0
    %150 = vmatpush1.bf16.msra.mxu0 0
    %151 = vmatprep.subr.bf16.mxu0 0
    %152 = vmatpush1.bf16.msra.mxu0 0
    %153 = vmatprep.subr.bf16.mxu0 0
    %154 = vmatpush1.bf16.msra.mxu0 0
    %155 = vmatprep.subr.bf16.mxu0 0
    %156 = vmatpush1.bf16.msra.mxu0 0
    %157 = vmatprep.subr.bf16.mxu0 0
    %158 = vmatpush1.bf16.msra.mxu0 0
    %159 = vmatprep.subr.bf16.mxu0 0
    %160 = vmatpush1.bf16.msra.mxu0 0
    %161 = vmatprep.subr.bf16.mxu0 0
    %162 = vmatpush1.bf16.msra.mxu0 0
    %163 = vmatprep.subr.bf16.mxu0 0
    %164 = vmatpush1.bf16.msra.mxu0 0
    %165 = vmatprep.mubr.bf16.mxu0 0
    %166 = vmatmul.mubr.bf16.gmra.mrb[0].mxu0 %v131
    %v167 = vpop.f32.mrb[0].mxu0
    %v168 = vadd.f32 %v127, %v167
    %v169 = vpop.f32.mrb[0].mxu0
    %v170 = vpop.f32.mrb[0].mxu0
    %v171 = vadd.f32 %v127, %v170
    %v172 = vpop.f32.mrb[0].mxu0
    %173 = vdwg.mxu0
    %v174 = vld [vmem:[#allocation2] sm:$0x3]
    %v177 = vunpack.c.l.s4 1966171168
    %v178 = vunpack.c.0.s8 %v177
    %v179 = vlaneseq
    %v180 = vshrl.u32 %v179, 7
    %v181 = vsub.s32 %v178, %v180
    %v182 = vrot.slane %v174, %v181
    %v183 = vcombine.high %v182, %v182
    %v185 = vunpack.c.l.s4 1966171168
    %v186 = vunpack.c.0.s8 %v185
    %v187 = vlaneseq
    %v188 = vshrl.u32 %v187, 7
    %v189 = vsub.s32 %v186, %v188
    %v190 = vrot.slane %v182, %v189
    %v192 = vunpack.c.l.s4 1966171168
    %v193 = vunpack.c.0.s8 %v192
    %v194 = vlaneseq
    %v195 = vshrl.u32 %v194, 7
    %v196 = vsub.s32 %v193, %v195
    %v197 = vrot.slane %v183, %v196
    %v198 = vlaneseq
    %v199 = vshrl.u32 %v198, 7
    %v200 = vsub.s32 0, %v199
    %v201 = vrot.slane %v190, %v200
    %v202 = vlaneseq
    %v203 = vshrl.u32 %v202, 7
    %v204 = vsub.s32 0, %v203
    %v205 = vrot.slane %v197, %v204
    %v208 = vadd.f32 %v168, %v201
    %v209 = vadd.f32 %v171, %v205
    %v210 = vtanh.pop %v208
    %v211 = vtanh.pop %v209
    %v212 = vld [vmem:[%s6] sm:$0x1]
    %v214 = vlaneseq
    %v215 = vshrl.u32 %v214, 7
    %v216 = vsub.s32 0, %v215
    %v217 = vrot.slane %v212, %v216
    %v219 = vmul.f32 %v210, %v217
    %v220 = vmul.f32 %v211, %v217
    %vm221 = vcmask 261120
    %v222 = vsel %vm221, %v219, 0.0
    %223 = vadd.xlane.f32.xlu0 %v222
    %v224 = vpop.xlane.xlu0 %223
    %v225 = vsel %vm221, %v220, 0.0
    %226 = vadd.xlane.f32.xlu0 %v225
    %v227 = vpop.xlane.xlu0 %226
    %v230 = vlaneseq
    %v231 = vand.u32 %v230, 127
    %v232 = vlaneseq
    %v233 = vshrl.u32 %v232, 7
    %v234 = vsub.s32 %v231, %v233
    %v235 = vrot.slane %v224, %v234
    %v236 = vlaneseq
    %v237 = vshrl.u32 %v236, 7
    %v238 = vsub.s32 %v231, %v237
    %v239 = vrot.slane %v227, %v238
    %vm240 = vcmask 1041409
    %v241 = vsel %vm240, %v239, %v235
    %s243 = smul.u32 0, 2
    %s244 = scalar_lea.vmem [#allocation8], %s243
    %vm245 = vcmask 58368
    %246 = vst.msk [vmem:[%s244] sm:$0x3] %vm245, %v241
    %v247 = vld [vmem:[#allocation3] sm:$0x3]
    %v248 = vsel %vm245, %v241, -inf
    %249 = vmax.xlane.f32.xlu0 %v248
    %v250 = vpop.xlane.xlu0 %249
    %v251 = vmax.f32 %v247, %v250
    %v252 = vsub.f32 %v247, %v251
    %v253 = vmul.f32 %v252, 1.442695
    %v254 = vpow.pop %v253
    %256 = vset.pattern.permute.xlu0 0
    %257 = vperm.xlu0 %256, %v251
    %v258 = vpop.permute.xlu0 %257
    %v259 = vlaneseq
    %v260 = vshrl.u32 %v259, 7
    %v261 = vsub.s32 0, %v260
    %v262 = vrot.slane %v258, %v261
    %v263 = vlaneseq
    %v264 = vshrl.u32 %v263, 7
    %v265 = vsub.s32 1, %v264
    %v266 = vrot.slane %v258, %v265
    %v269 = vsub.f32 %v224, %v262
    %v270 = vsub.f32 %v227, %v266
    %v271 = vmul.f32 %v269, 1.442695
    %v272 = vpow.pop %v271
    %v273 = vmul.f32 %v270, 1.442695
    %v274 = vpow.pop %v273
    %v275 = vld [vmem:[#allocation4] sm:$0x3]
    %v276 = vmul.f32 %v254, %v275
    %279 = vset.pattern.permute.xlu0 0
    %280 = vperm.xlu0 %279, %v272
    %v281 = vpop.permute.xlu0 %280
    %282 = vset.pattern.permute.xlu0 0
    %283 = vperm.xlu0 %282, %v274
    %v284 = vpop.permute.xlu0 %283
    %v285 = vlaneseq
    %v286 = vshrl.u32 %v285, 7
    %v287 = vsub.s32 %v231, %v286
    %v288 = vrot.slane %v281, %v287
    %v289 = vlaneseq
    %v290 = vshrl.u32 %v289, 7
    %v291 = vsub.s32 %v231, %v290
    %v292 = vrot.slane %v284, %v291
    %v293 = vsel %vm240, %v292, %v288
    %v295 = vsel %vm245, %v293, 0.0
    %296 = vadd.xlane.f32.xlu0 %v295
    %v297 = vpop.xlane.xlu0 %296
    %v298 = vadd.f32 %v276, %v297
    %vm299 = vcmask 1024
    %300 = vst.msk [vmem:[#allocation4] sm:$0x3] %vm299, %v298
    %v301 = vld [vmem:[#allocation5] sm:$0x3]
    %303 = vset.pattern.permute.xlu0 0
    %304 = vperm.xlu0 %303, %v254
    %v305 = vpop.permute.xlu0 %304
    %v307 = vmul.f32 %v305, %v301
    %v310 = vmul.f32 %v281, %v107
    %v311 = vmul.f32 %v284, %v108
    %v312 = vsel %vm129, %v310, 0.0
    %v313 = vrot.slane %v312, 4
    %v314 = vadd.f32 %v312, %v313
    %v315 = vrot.slane %v314, 2
    %v316 = vadd.f32 %v314, %v315
    %v317 = vrot.slane %v316, 1
    %v318 = vadd.f32 %v316, %v317
    %v319 = vsel %vm129, %v311, 0.0
    %v320 = vrot.slane %v319, 4
    %v321 = vadd.f32 %v319, %v320
    %v322 = vrot.slane %v321, 2
    %v323 = vadd.f32 %v321, %v322
    %v324 = vrot.slane %v323, 1
    %v325 = vadd.f32 %v323, %v324
    %v328 = vsel %vm240, %v325, %v318
    %v330 = vadd.f32 %v307, %v328
    %vm331 = vcmask 517120
    %332 = vst.msk [vmem:[#allocation5] sm:$0x3] %vm331, %v330
    %333 = vst.msk [vmem:[#allocation3] sm:$0x3] %vm299, %v251
    // Predicated region
    $region34: #{tpu_custom_call.1} parent=1 // pred_check
      %p334 = pneg %p31
    $region35: #{tpu_custom_call.1} parent=1 // pred_check_branch
      %336 = sbr.rel (%p334) target = $region37
    $region36: #{tpu_custom_call.1} parent=1 // pred_region
      %v337 = vld [vmem:[#allocation4] sm:$0x3]
      %v338 = vrcp.pop %v337
      %v339 = vld [vmem:[#allocation5] sm:$0x3]
      %341 = vset.pattern.permute.xlu0 0
      %342 = vperm.xlu0 %341, %v338
      %v343 = vpop.permute.xlu0 %342
      %v345 = vmul.f32 %v339, %v343
      %346 = vst.msk [vmem:[#allocation6] sm:$0x3] %vm331, %v345
      %v347 = vld [vmem:[#allocation8] sm:$0x3]
      %v348 = vld [vmem:[#allocation3] sm:$0x3]
      %350 = vset.pattern.permute.xlu0 0
      %351 = vperm.xlu0 %350, %v348
      %v352 = vpop.permute.xlu0 %351
      %v354 = vsub.f32 %v347, %v352
      %v355 = vmul.f32 %v354, 1.442695
      %v356 = vpow.pop %v355
      %v357 = vmul.f32 %v356, %v343
      %358 = vst.msk [vmem:[#allocation8] sm:$0x3] %vm245, %v357
    $region37: #{tpu_custom_call.1} parent=1 // pred_fallthru
      _
    // Predicated region
    $region38: #{tpu_custom_call.1} parent=1 // pred_check
      _
    $region39: #{tpu_custom_call.1} parent=1 // pred_check_branch
      %360 = sbr.rel (0) target = $region41
    $region40: #{tpu_custom_call.1} parent=1 // pred_region
      %s362 = ssub.s32 32, 32
      %363 = vsyncadd [#allocation7], %s362
      %s365 = sshll.u32 [#allocation6], 4
      %s366 = int_to_ptr.vmem [resolvable:$true] %s365
      %368 = dma.vmem_to_hbm [thread:$0]  %s366, 32, %s7, [#allocation7]
    $region41: #{tpu_custom_call.1} parent=1 // pred_fallthru
      _
    // Predicated region
    $region42: #{tpu_custom_call.1} parent=1 // pred_check
      _
    $region43: #{tpu_custom_call.1} parent=1 // pred_check_branch
      %370 = sbr.rel (0) target = $region45
    $region44: #{tpu_custom_call.1} parent=1 // pred_region
      %s372 = ssub.s32 32, 32
      %373 = vsyncadd [#allocation9], %s372
      %s375 = sshll.u32 [#allocation8], 4
      %s376 = int_to_ptr.vmem [resolvable:$true] %s375
      %378 = dma.vmem_to_hbm [thread:$0]  %s376, 32, %s8, [#allocation9]
    $region45: #{tpu_custom_call.1} parent=1 // pred_fallthru
      _
    // Predicated region
    $region46: #{tpu_custom_call.1} parent=1 // pred_check
      _
    $region47: #{tpu_custom_call.1} parent=1 // pred_check_branch
      %380 = sbr.rel (0) target = $region49
    $region48: #{tpu_custom_call.1} parent=1 // pred_region
      %381 = dma.done [#allocation7], 32
    $region49: #{tpu_custom_call.1} parent=1 // pred_fallthru
      _
    // Predicated region
    $region50: #{tpu_custom_call.1} parent=1 // pred_check
      _
    $region51: #{tpu_custom_call.1} parent=1 // pred_check_branch
      %383 = sbr.rel (0) target = $region53
    $region52: #{tpu_custom_call.1} parent=1 // pred_region
      %384 = dma.done [#allocation9], 32
    $region53: #{tpu_custom_call.1} parent=1 // pred_fallthru
      _
    %385 = vsyncpa [#allocation7], 1
    %386 = vsyncpa [#allocation9], 1

// kernel: tpu_custom_call.1
$region0: #{tpu_custom_call.1}
  #allocation0 [shape = 'u32[]', space=smem, size = 0x4, offset = 0x4, fixed_abs, tag = 'smem constant byte address 0x4 - core index']
  #allocation1 [shape = 'u32[144,128]{1,0:T(1,128)}', space=vmem, size = 0x12000, scoped, tag = 'internal scratch']
  #allocation2 [shape = 'f32[2,32]{1,0:T(2,128)}', space=vmem, size = 0x400, scoped, tag = 'scratch operand']
  #allocation3 [shape = 'f32[2,1]{1,0:T(2,128)}', space=vmem, size = 0x400, scoped, tag = 'scratch operand']
  #allocation4 [shape = 'f32[2,1]{1,0:T(2,128)}', space=vmem, size = 0x400, scoped, tag = 'scratch operand']
  #allocation5 [shape = 'f32[2,64]{1,0:T(2,128)}', space=vmem, size = 0x400, scoped, tag = 'scratch operand']
  %s0 = inlined_call_operand.vmem [shape: f32[2,64], index: 0, kind: input, shape index: {}]
  %s1 = inlined_call_operand.vmem [shape: f32[2,8,64], index: 1, kind: input, shape index: {}]
  %s2 = inlined_call_operand.vmem [shape: f32[64,32], index: 2, kind: input, shape index: {}]
  %s3 = inlined_call_operand.vmem [shape: f32[1,32], index: 3, kind: input, shape index: {}]
  %s4 = inlined_call_operand.vmem [shape: f32[64,32], index: 4, kind: input, shape index: {}]
  %s5 = inlined_call_operand.vmem [shape: f32[1,32], index: 5, kind: input, shape index: {}]
  %s6 = inlined_call_operand.vmem [shape: f32[1,32], index: 6, kind: input, shape index: {}]
  %s7 = inlined_call_operand.hbm [shape: f32[2,64], index: 7, kind: output, shape index: {0}]
  %s8 = inlined_call_operand.hbm [shape: f32[1,2,8], index: 8, kind: output, shape index: {1}]
  %9 = xla_tuple %s7, %s8
  %s10 = sld [smem:[#allocation0]]
  $region54: #{tpu_custom_call.1} parent=0
    _
  %s12 = ssub.s32 1, %s10
  %s13 = scalar_select 0, %s12, %s10
  $region1: #{tpu_custom_call.1} parent=0
    #allocation6 [shape = 'u8[1024]{0}', space=vmem, size = 0x400, scoped, tag = 'output window, operand 0, single buffered']
    #allocation7 [shape = 's32[1]{0}', space=sflag, size = 0x4, scoped, tag = 'scoped memory for tpu_custom_call.1']
    #allocation8 [shape = 'u8[1024]{0}', space=vmem, size = 0x400, scoped, tag = 'output window, operand 1, single buffered']
    #allocation9 [shape = 's32[1]{0}', space=sflag, size = 0x4, scoped, tag = 'scoped memory for tpu_custom_call.1']
    %14 = vsyncpa [#allocation7], 0
    %15 = vsyncpa [#allocation9], 0
    // Predicated region
    $region2: #{tpu_custom_call.1} parent=1 // pred_check
      _
    $region3: #{tpu_custom_call.1} parent=1 // pred_check_branch
      %17 = sbr.rel (0) target = $region5
    $region4: #{tpu_custom_call.1} parent=1 // pred_region
      _
    $region5: #{tpu_custom_call.1} parent=1 // pred_fallthru
      _
    // Predicated region
    $region6: #{tpu_custom_call.1} parent=1 // pred_check
      _
    $region7: #{tpu_custom_call.1} parent=1 // pred_check_branch
      %19 = sbr.rel (0) target = $region9
    $region8: #{tpu_custom_call.1} parent=1 // pred_region
      _
    $region9: #{tpu_custom_call.1} parent=1 // pred_fallthru
      _
    // Predicated region
    $region10: #{tpu_custom_call.1} parent=1 // pred_check
      _
    $region11: #{tpu_custom_call.1} parent=1 // pred_check_branch
      %21 = sbr.rel (0) target = $region13
    $region12: #{tpu_custom_call.1} parent=1 // pred_region
      _
    $region13: #{tpu_custom_call.1} parent=1 // pred_fallthru
      _
    // Predicated region
    $region14: #{tpu_custom_call.1} parent=1 // pred_check
      _
    $region15: #{tpu_custom_call.1} parent=1 // pred_check_branch
      %23 = sbr.rel (0) target = $region17
    $region16: #{tpu_custom_call.1} parent=1 // pred_region
      _
    $region17: #{tpu_custom_call.1} parent=1 // pred_fallthru
      _
    // Predicated region
    $region18: #{tpu_custom_call.1} parent=1 // pred_check
      _
    $region19: #{tpu_custom_call.1} parent=1 // pred_check_branch
      %25 = sbr.rel (0) target = $region21
    $region20: #{tpu_custom_call.1} parent=1 // pred_region
      _
    $region21: #{tpu_custom_call.1} parent=1 // pred_fallthru
      _
    // Predicated region
    $region22: #{tpu_custom_call.1} parent=1 // pred_check
      _
    $region23: #{tpu_custom_call.1} parent=1 // pred_check_branch
      %27 = sbr.rel (0) target = $region25
    $region24: #{tpu_custom_call.1} parent=1 // pred_region
      _
    $region25: #{tpu_custom_call.1} parent=1 // pred_fallthru
      _
    // Predicated region
    $region26: #{tpu_custom_call.1} parent=1 // pred_check
      _
    $region27: #{tpu_custom_call.1} parent=1 // pred_check_branch
      %29 = sbr.rel (0) target = $region29
    $region28: #{tpu_custom_call.1} parent=1 // pred_region
      _
    $region29: #{tpu_custom_call.1} parent=1 // pred_fallthru
      _
    %p31 = scmp.eq.s32.totalorder 0, 0
    // Predicated region
    $region30: #{tpu_custom_call.1} parent=1 // pred_check
      %p32 = pneg %p31
    $region31: #{tpu_custom_call.1} parent=1 // pred_check_branch
      %34 = sbr.rel (%p32) target = $region33
    $region32: #{tpu_custom_call.1} parent=1 // pred_region
      %v35 = vld [vmem:[%s0] sm:$0x3]
      %v36 = vpack.c.bf16 %v35, %v35
      %v37 = vld [vmem:[%s2] sm:$0xff]
      %v38 = vld [vmem:[%s2 + $0x8] sm:$0xff]
      %v39 = vld [vmem:[%s2 + $0x10] sm:$0xff]
      %v40 = vld [vmem:[%s2 + $0x18] sm:$0xff]
      %v41 = vld [vmem:[%s2 + $0x20] sm:$0xff]
      %v42 = vld [vmem:[%s2 + $0x28] sm:$0xff]
      %v43 = vld [vmem:[%s2 + $0x30] sm:$0xff]
      %v44 = vld [vmem:[%s2 + $0x38] sm:$0xff]
      %v45 = vpack.c.bf16 %v38, %v37
      %v46 = vpack.c.bf16 %v40, %v39
      %v47 = vpack.c.bf16 %v42, %v41
      %v48 = vpack.c.bf16 %v44, %v43
      %v49 = vld [vmem:[%s3] sm:$0x1]
      %v51 = vlaneseq
      %v52 = vshrl.u32 %v51, 7
      %v53 = vsub.s32 0, %v52
      %v54 = vrot.slane %v49, %v53
      %vm56 = vcmask 523264
      %v58 = vsel %vm56, %v36, 0
      %60 = vmatprep.subr.bf16.mxu0 0
      %61 = vmatpush1.bf16.msra.mxu0 %v45
      %62 = vmatprep.subr.bf16.mxu0 0
      %63 = vmatpush1.bf16.msra.mxu0 %v46
      %64 = vmatprep.subr.bf16.mxu0 0
      %65 = vmatpush1.bf16.msra.mxu0 %v47
      %66 = vmatprep.subr.bf16.mxu0 0
      %67 = vmatpush1.bf16.msra.mxu0 %v48
      %68 = vmatprep.subr.bf16.mxu0 0
      %69 = vmatpush1.bf16.msra.mxu0 0
      %70 = vmatprep.subr.bf16.mxu0 0
      %71 = vmatpush1.bf16.msra.mxu0 0
      %72 = vmatprep.subr.bf16.mxu0 0
      %73 = vmatpush1.bf16.msra.mxu0 0
      %74 = vmatprep.subr.bf16.mxu0 0
      %75 = vmatpush1.bf16.msra.mxu0 0
      %76 = vmatprep.subr.bf16.mxu0 0
      %77 = vmatpush1.bf16.msra.mxu0 0
      %78 = vmatprep.subr.bf16.mxu0 0
      %79 = vmatpush1.bf16.msra.mxu0 0
      %80 = vmatprep.subr.bf16.mxu0 0
      %81 = vmatpush1.bf16.msra.mxu0 0
      %82 = vmatprep.subr.bf16.mxu0 0
      %83 = vmatpush1.bf16.msra.mxu0 0
      %84 = vmatprep.subr.bf16.mxu0 0
      %85 = vmatpush1.bf16.msra.mxu0 0
      %86 = vmatprep.subr.bf16.mxu0 0
      %87 = vmatpush1.bf16.msra.mxu0 0
      %88 = vmatprep.subr.bf16.mxu0 0
      %89 = vmatpush1.bf16.msra.mxu0 0
      %90 = vmatprep.subr.bf16.mxu0 0
      %91 = vmatpush1.bf16.msra.mxu0 0
      %92 = vmatprep.mubr.bf16.mxu0 0
      %93 = vmatmul.mubr.bf16.gmra.mrb[0].mxu0 %v58
      %v94 = vpop.f32.mrb[0].mxu0
      %v95 = vadd.f32 %v54, %v94
      %v96 = vpop.f32.mrb[0].mxu0
      %v97 = vpop.f32.mrb[0].mxu0
      %v98 = vpop.f32.mrb[0].mxu0
      %99 = vdwg.mxu0
      %vm100 = vcmask 254976
      %101 = vst.msk [vmem:[#allocation2] sm:$0x3] %vm100, %v95
      %vm102 = vcmask 1024
      %103 = vst.msk [vmem:[#allocation3] sm:$0x3] %vm102, -inf
      %104 = vst.msk [vmem:[#allocation4] sm:$0x3] %vm102, 0.0
      %vm105 = vcmask 517120
      %106 = vst.msk [vmem:[#allocation5] sm:$0x3] %vm105, 0.0
    $region33: #{tpu_custom_call.1} parent=1 // pred_fallthru
      _
    %v107 = vld [vmem:[%s1] sm:$0xff]
    %v108 = vld [vmem:[%s1 + $0x8] sm:$0xff]
    %v109 = vpack.c.bf16 %v108, %v107
    %v110 = vld [vmem:[%s4] sm:$0xff]
    %v111 = vld [vmem:[%s4 + $0x8] sm:$0xff]
    %v112 = vld [vmem:[%s4 + $0x10] sm:$0xff]
    %v113 = vld [vmem:[%s4 + $0x18] sm:$0xff]
    %v114 = vld [vmem:[%s4 + $0x20] sm:$0xff]
    %v115 = vld [vmem:[%s4 + $0x28] sm:$0xff]
    %v116 = vld [vmem:[%s4 + $0x30] sm:$0xff]
    %v117 = vld [vmem:[%s4 + $0x38] sm:$0xff]
    %v118 = vpack.c.bf16 %v111, %v110
    %v119 = vpack.c.bf16 %v113, %v112
    %v120 = vpack.c.bf16 %v115, %v114
    %v121 = vpack.c.bf16 %v117, %v116
    %v122 = vld [vmem:[%s5] sm:$0x1]
    %v124 = vlaneseq
    %v125 = vshrl.u32 %v124, 7
    %v126 = vsub.s32 0, %v125
    %v127 = vrot.slane %v122, %v126
    %vm129 = vcmask 523264
    %v131 = vsel %vm129, %v109, 0
    %133 = vmatprep.subr.bf16.mxu0 0
    %134 = vmatpush1.bf16.msra.mxu0 %v118
    %135 = vmatprep.subr.bf16.mxu0 0
    %136 = vmatpush1.bf16.msra.mxu0 %v119
    %137 = vmatprep.subr.bf16.mxu0 0
    %138 = vmatpush1.bf16.msra.mxu0 %v120
    %139 = vmatprep.subr.bf16.mxu0 0
    %140 = vmatpush1.bf16.msra.mxu0 %v121
    %141 = vmatprep.subr.bf16.mxu0 0
    %142 = vmatpush1.bf16.msra.mxu0 0
    %143 = vmatprep.subr.bf16.mxu0 0
    %144 = vmatpush1.bf16.msra.mxu0 0
    %145 = vmatprep.subr.bf16.mxu0 0
    %146 = vmatpush1.bf16.msra.mxu0 0
    %147 = vmatprep.subr.bf16.mxu0 0
    %148 = vmatpush1.bf16.msra.mxu0 0
    %149 = vmatprep.subr.bf16.mxu0 0
    %150 = vmatpush1.bf16.msra.mxu0 0
    %151 = vmatprep.subr.bf16.mxu0 0
    %152 = vmatpush1.bf16.msra.mxu0 0
    %153 = vmatprep.subr.bf16.mxu0 0
    %154 = vmatpush1.bf16.msra.mxu0 0
    %155 = vmatprep.subr.bf16.mxu0 0
    %156 = vmatpush1.bf16.msra.mxu0 0
    %157 = vmatprep.subr.bf16.mxu0 0
    %158 = vmatpush1.bf16.msra.mxu0 0
    %159 = vmatprep.subr.bf16.mxu0 0
    %160 = vmatpush1.bf16.msra.mxu0 0
    %161 = vmatprep.subr.bf16.mxu0 0
    %162 = vmatpush1.bf16.msra.mxu0 0
    %163 = vmatprep.subr.bf16.mxu0 0
    %164 = vmatpush1.bf16.msra.mxu0 0
    %165 = vmatprep.mubr.bf16.mxu0 0
    %166 = vmatmul.mubr.bf16.gmra.mrb[0].mxu0 %v131
    %v167 = vpop.f32.mrb[0].mxu0
    %v168 = vadd.f32 %v127, %v167
    %v169 = vpop.f32.mrb[0].mxu0
    %v170 = vpop.f32.mrb[0].mxu0
    %v171 = vadd.f32 %v127, %v170
    %v172 = vpop.f32.mrb[0].mxu0
    %173 = vdwg.mxu0
    %v174 = vld [vmem:[#allocation2] sm:$0x3]
    %v177 = vunpack.c.l.s4 1966171168
    %v178 = vunpack.c.0.s8 %v177
    %v179 = vlaneseq
    %v180 = vshrl.u32 %v179, 7
    %v181 = vsub.s32 %v178, %v180
    %v182 = vrot.slane %v174, %v181
    %v183 = vcombine.high %v182, %v182
    %v185 = vunpack.c.l.s4 1966171168
    %v186 = vunpack.c.0.s8 %v185
    %v187 = vlaneseq
    %v188 = vshrl.u32 %v187, 7
    %v189 = vsub.s32 %v186, %v188
    %v190 = vrot.slane %v182, %v189
    %v192 = vunpack.c.l.s4 1966171168
    %v193 = vunpack.c.0.s8 %v192
    %v194 = vlaneseq
    %v195 = vshrl.u32 %v194, 7
    %v196 = vsub.s32 %v193, %v195
    %v197 = vrot.slane %v183, %v196
    %v198 = vlaneseq
    %v199 = vshrl.u32 %v198, 7
    %v200 = vsub.s32 0, %v199
    %v201 = vrot.slane %v190, %v200
    %v202 = vlaneseq
    %v203 = vshrl.u32 %v202, 7
    %v204 = vsub.s32 0, %v203
    %v205 = vrot.slane %v197, %v204
    %v208 = vadd.f32 %v168, %v201
    %v209 = vadd.f32 %v171, %v205
    %v210 = vtanh.pop %v208
    %v211 = vtanh.pop %v209
    %v212 = vld [vmem:[%s6] sm:$0x1]
    %v214 = vlaneseq
    %v215 = vshrl.u32 %v214, 7
    %v216 = vsub.s32 0, %v215
    %v217 = vrot.slane %v212, %v216
    %v219 = vmul.f32 %v210, %v217
    %v220 = vmul.f32 %v211, %v217
    %vm221 = vcmask 261120
    %v222 = vsel %vm221, %v219, 0.0
    %223 = vadd.xlane.f32.xlu0 %v222
    %v224 = vpop.xlane.xlu0 %223
    %v225 = vsel %vm221, %v220, 0.0
    %226 = vadd.xlane.f32.xlu0 %v225
    %v227 = vpop.xlane.xlu0 %226
    %v230 = vlaneseq
    %v231 = vand.u32 %v230, 127
    %v232 = vlaneseq
    %v233 = vshrl.u32 %v232, 7
    %v234 = vsub.s32 %v231, %v233
    %v235 = vrot.slane %v224, %v234
    %v236 = vlaneseq
    %v237 = vshrl.u32 %v236, 7
    %v238 = vsub.s32 %v231, %v237
    %v239 = vrot.slane %v227, %v238
    %vm240 = vcmask 1041409
    %v241 = vsel %vm240, %v239, %v235
    %s243 = smul.u32 0, 2
    %s244 = scalar_lea.vmem [#allocation8], %s243
    %vm245 = vcmask 58368
    %246 = vst.msk [vmem:[%s244] sm:$0x3] %vm245, %v241
    %v247 = vld [vmem:[#allocation3] sm:$0x3]
    %v248 = vsel %vm245, %v241, -inf
    %249 = vmax.xlane.f32.xlu0 %v248
    %v250 = vpop.xlane.xlu0 %249
    %v251 = vmax.f32 %v247, %v250
    %v252 = vsub.f32 %v247, %v251
    %v253 = vmul.f32 %v252, 1.442695
    %v254 = vpow.pop %v253
    %256 = vset.pattern.permute.xlu0 0
    %257 = vperm.xlu0 %256, %v251
    %v258 = vpop.permute.xlu0 %257
    %v259 = vlaneseq
    %v260 = vshrl.u32 %v259, 7
    %v261 = vsub.s32 0, %v260
    %v262 = vrot.slane %v258, %v261
    %v263 = vlaneseq
    %v264 = vshrl.u32 %v263, 7
    %v265 = vsub.s32 1, %v264
    %v266 = vrot.slane %v258, %v265
    %v269 = vsub.f32 %v224, %v262
    %v270 = vsub.f32 %v227, %v266
    %v271 = vmul.f32 %v269, 1.442695
    %v272 = vpow.pop %v271
    %v273 = vmul.f32 %v270, 1.442695
    %v274 = vpow.pop %v273
    %v275 = vld [vmem:[#allocation4] sm:$0x3]
    %v276 = vmul.f32 %v254, %v275
    %279 = vset.pattern.permute.xlu0 0
    %280 = vperm.xlu0 %279, %v272
    %v281 = vpop.permute.xlu0 %280
    %282 = vset.pattern.permute.xlu0 0
    %283 = vperm.xlu0 %282, %v274
    %v284 = vpop.permute.xlu0 %283
    %v285 = vlaneseq
    %v286 = vshrl.u32 %v285, 7
    %v287 = vsub.s32 %v231, %v286
    %v288 = vrot.slane %v281, %v287
    %v289 = vlaneseq
    %v290 = vshrl.u32 %v289, 7
    %v291 = vsub.s32 %v231, %v290
    %v292 = vrot.slane %v284, %v291
    %v293 = vsel %vm240, %v292, %v288
    %v295 = vsel %vm245, %v293, 0.0
    %296 = vadd.xlane.f32.xlu0 %v295
    %v297 = vpop.xlane.xlu0 %296
    %v298 = vadd.f32 %v276, %v297
    %vm299 = vcmask 1024
    %300 = vst.msk [vmem:[#allocation4] sm:$0x3] %vm299, %v298
    %v301 = vld [vmem:[#allocation5] sm:$0x3]
    %303 = vset.pattern.permute.xlu0 0
    %304 = vperm.xlu0 %303, %v254
    %v305 = vpop.permute.xlu0 %304
    %v307 = vmul.f32 %v305, %v301
    %v310 = vmul.f32 %v281, %v107
    %v311 = vmul.f32 %v284, %v108
    %v312 = vsel %vm129, %v310, 0.0
    %v313 = vrot.slane %v312, 4
    %v314 = vadd.f32 %v312, %v313
    %v315 = vrot.slane %v314, 2
    %v316 = vadd.f32 %v314, %v315
    %v317 = vrot.slane %v316, 1
    %v318 = vadd.f32 %v316, %v317
    %v319 = vsel %vm129, %v311, 0.0
    %v320 = vrot.slane %v319, 4
    %v321 = vadd.f32 %v319, %v320
    %v322 = vrot.slane %v321, 2
    %v323 = vadd.f32 %v321, %v322
    %v324 = vrot.slane %v323, 1
    %v325 = vadd.f32 %v323, %v324
    %v328 = vsel %vm240, %v325, %v318
    %v330 = vadd.f32 %v307, %v328
    %vm331 = vcmask 517120
    %332 = vst.msk [vmem:[#allocation5] sm:$0x3] %vm331, %v330
    %333 = vst.msk [vmem:[#allocation3] sm:$0x3] %vm299, %v251
    // Predicated region
    $region34: #{tpu_custom_call.1} parent=1 // pred_check
      %p334 = pneg %p31
    $region35: #{tpu_custom_call.1} parent=1 // pred_check_branch
      %336 = sbr.rel (%p334) target = $region37
    $region36: #{tpu_custom_call.1} parent=1 // pred_region
      %v337 = vld [vmem:[#allocation4] sm:$0x3]
      %v338 = vrcp.pop %v337
      %v339 = vld [vmem:[#allocation5] sm:$0x3]
      %341 = vset.pattern.permute.xlu0 0
      %342 = vperm.xlu0 %341, %v338
      %v343 = vpop.permute.xlu0 %342
      %v345 = vmul.f32 %v339, %v343
      %346 = vst.msk [vmem:[#allocation6] sm:$0x3] %vm331, %v345
      %v347 = vld [vmem:[#allocation8] sm:$0x3]
      %v348 = vld [vmem:[#allocation3] sm:$0x3]
      %350 = vset.pattern.permute.xlu0 0
      %351 = vperm.xlu0 %350, %v348
      %v352 = vpop.permute.xlu0 %351
      %v354 = vsub.f32 %v347, %v352
      %v355 = vmul.f32 %v354, 1.442695
      %v356 = vpow.pop %v355
      %v357 = vmul.f32 %v356, %v343
      %358 = vst.msk [vmem:[#allocation8] sm:$0x3] %vm245, %v357
    $region37: #{tpu_custom_call.1} parent=1 // pred_fallthru
      _
    // Predicated region
    $region38: #{tpu_custom_call.1} parent=1 // pred_check
      _
    $region39: #{tpu_custom_call.1} parent=1 // pred_check_branch
      %360 = sbr.rel (0) target = $region41
    $region40: #{tpu_custom_call.1} parent=1 // pred_region
      %s362 = ssub.s32 32, 32
      %363 = vsyncadd [#allocation7], %s362
      %s365 = sshll.u32 [#allocation6], 4
      %s366 = int_to_ptr.vmem [resolvable:$true] %s365
      %368 = dma.vmem_to_hbm [thread:$0]  %s366, 32, %s7, [#allocation7]
    $region41: #{tpu_custom_call.1} parent=1 // pred_fallthru
      _
    // Predicated region
    $region42: #{tpu_custom_call.1} parent=1 // pred_check
      _
    $region43: #{tpu_custom_call.1} parent=1 // pred_check_branch
      %370 = sbr.rel (0) target = $region45
    $region44: #{tpu_custom_call.1} parent=1 // pred_region
      %s372 = ssub.s32 32, 32
      %373 = vsyncadd [#allocation9], %s372
      %s375 = sshll.u32 [#allocation8], 4
      %s376 = int_to_ptr.vmem [resolvable:$true] %s375
      %378 = dma.vmem_to_hbm [thread:$0]  %s376, 32, %s8, [#allocation9]
    $region45: #{tpu_custom_call.1} parent=1 // pred_fallthru
      _
    // Predicated region
    $region46: #{tpu_custom_call.1} parent=1 // pred_check
      _
    $region47: #{tpu_custom_call.1} parent=1 // pred_check_branch
      %380 = sbr.rel (0) target = $region49
    $region48: #{tpu_custom_call.1} parent=1 // pred_region
      %381 = dma.done [#allocation7], 32
    $region49: #{tpu_custom_call.1} parent=1 // pred_fallthru
      _
    // Predicated region
    $region50: #{tpu_custom_call.1} parent=1 // pred_check
      _
    $region51: #{tpu_custom_call.1} parent=1 // pred_check_branch
      %383 = sbr.rel (0) target = $region53
    $region52: #{tpu_custom_call.1} parent=1 // pred_region
      %384 = dma.done [#allocation9], 32
    $region53: #{tpu_custom_call.1} parent=1 // pred_fallthru
      _
    %385 = vsyncpa [#allocation7], 1
    %386 = vsyncpa [#allocation9], 1

</llo_original>
